<compile_context>
chip_gen: v5e
topology: v5e:2x2
jax: 0.10.0
libtpu: 0.0.40
codegen_flags: <defaults>
</compile_context>

<pallas_src>
import jax
import jax.numpy as jnp
from jax.experimental import pallas as pl
from jax.experimental.pallas import tpu as pltpu  # noqa: F401  (TPU backend)


def qnetwork_kernel(x_ref, w1_ref, b1_ref, w2_ref, b2_ref, w3_ref, b3_ref,
                    out_ref):
    """Fused relu(x@W1+b1) -> relu(.@W2+b2) -> .@W3+b3 in one invocation."""
    x = x_ref[...]                                                   # f32 (B, S)

    # fc1 (tiny, keep f32) + ReLU
    h1 = jnp.dot(x, w1_ref[...], preferred_element_type=jnp.float32)
    h1 = jnp.maximum(h1 + b1_ref[...], 0.0)

    # fc2: bf16 inputs on the MXU, f32 accumulation, ReLU
    h2 = jnp.dot(h1.astype(jnp.bfloat16), w2_ref[...],
                 preferred_element_type=jnp.float32)
    h2 = jnp.maximum(h2 + b2_ref[...], 0.0)

    # fc3: bf16 inputs, f32 accumulation
    q = jnp.dot(h2.astype(jnp.bfloat16), w3_ref[...],
                preferred_element_type=jnp.float32)
    out_ref[...] = (q + b3_ref[...]).astype(out_ref.dtype)


def qnetwork_forward(x, params):
    """x: (B, state_size) f32 -> (B, action_size) f32 Q-values."""
    w1, b1, w2, b2, w3, b3 = params
    B, state_size = x.shape
    hidden1 = w1.shape[1]
    hidden2 = w2.shape[1]
    action_size = w3.shape[1]

    flops = 2 * B * (state_size * hidden1 + hidden1 * hidden2
                     + hidden2 * action_size)
    bytes_accessed = sum(int(a.size) * a.dtype.itemsize
                         for a in (x, w1, b1, w2, b2, w3, b3))
    bytes_accessed += B * action_size * 4          # output writeback

    # Single grid step: every operand is one full-array block, DMA'd into
    # VMEM once.  No tiling, no recompute, no per-step pipeline overhead.
    return pl.pallas_call(
        qnetwork_kernel,
        out_shape=jax.ShapeDtypeStruct((B, action_size), jnp.float32),
        cost_estimate=pl.CostEstimate(
            flops=flops, transcendentals=0, bytes_accessed=bytes_accessed),
    )(x, w1, b1, w2, b2, w3, b3)


def init_params(key, state_size, action_size):
    """PyTorch nn.Linear-style init (uniform(+-1/sqrt(fan_in))).

    Weights stored pre-transposed as (in, out).  W2/W3 are bf16 (MXU-native,
    halves the dominant weight DMA); biases stay f32.
    """
    def linear(k, fan_in, fan_out, w_dtype):
        kw, kb = jax.random.split(k)
        bound = 1.0 / float(fan_in) ** 0.5
        w = jax.random.uniform(kw, (fan_in, fan_out), jnp.float32,
                               -bound, bound).astype(w_dtype)
        b = jax.random.uniform(kb, (1, fan_out), jnp.float32, -bound, bound)
        return w, b

    k1, k2, k3 = jax.random.split(key, 3)
    w1, b1 = linear(k1, state_size, 128, jnp.float32)     # tiny: keep f32
    w2, b2 = linear(k2, 128, 256, jnp.bfloat16)
    w3, b3 = linear(k3, 256, action_size, jnp.bfloat16)
    return (w1, b1, w2, b2, w3, b3)


if __name__ == "__main__":
    STATE_SIZE = 7          # joint angles
    ACTION_SIZE = 2187      # 3**7 discrete actions
    BATCH = 8

    key = jax.random.PRNGKey(0)
    k_params, k_x = jax.random.split(key)

    params = init_params(k_params, STATE_SIZE, ACTION_SIZE)
    x = jax.random.normal(k_x, (BATCH, STATE_SIZE), jnp.float32)

    q_values = qnetwork_forward(x, params)
    jax.block_until_ready(q_values)
    assert q_values.shape == (BATCH, ACTION_SIZE)

    w1, b1, w2, b2, w3, b3 = params

    # Reference 1: mirrors the kernel's exact numerical path (bf16 weights,
    # bf16 activation casts before fc2/fc3, f32 accumulation) -> tight tol.
    h1 = jnp.maximum(
        jnp.dot(x, w1, preferred_element_type=jnp.float32) + b1, 0.0)
    h2 = jnp.maximum(
        jnp.dot(h1.astype(jnp.bfloat16), w2,
                preferred_element_type=jnp.float32) + b2, 0.0)
    ref_bf16 = jnp.dot(h2.astype(jnp.bfloat16), w3,
                       preferred_element_type=jnp.float32) + b3
    assert jnp.allclose(q_values, ref_bf16, atol=1e-3, rtol=1e-3), (
        float(jnp.max(jnp.abs(q_values - ref_bf16))))

    # DQN cares about argmax over actions: must agree with the reference.
    assert bool(jnp.all(jnp.argmax(q_values, axis=-1)
                        == jnp.argmax(ref_bf16, axis=-1)))

    # Reference 2: pure-f32 math with the same (bf16-quantized) weights, just
    # as a sanity band on the bf16 activation casts.
    ref_f32 = jnp.maximum(x @ w1 + b1, 0.0)
    ref_f32 = jnp.maximum(ref_f32 @ w2.astype(jnp.float32) + b2, 0.0)
    ref_f32 = ref_f32 @ w3.astype(jnp.float32) + b3
    assert jnp.allclose(q_values, ref_f32, atol=2e-2, rtol=2e-2), (
        float(jnp.max(jnp.abs(q_values - ref_f32))))

    print("KERNEL_OK")
</pallas_src>

<mosaic_0001>
module attributes {stable_mosaic.version = 11 : i64} {
  func.func @qnetwork_kernel(%arg0: memref<8x7xf32, #tpu.memory_space<vmem>>, %arg1: memref<7x128xf32, #tpu.memory_space<vmem>>, %arg2: memref<1x128xf32, #tpu.memory_space<vmem>>, %arg3: memref<128x256xbf16, #tpu.memory_space<vmem>>, %arg4: memref<1x256xf32, #tpu.memory_space<vmem>>, %arg5: memref<256x2187xbf16, #tpu.memory_space<vmem>>, %arg6: memref<1x2187xf32, #tpu.memory_space<vmem>>, %arg7: memref<8x2187xf32, #tpu.memory_space<vmem>>) attributes {dimension_semantics = [], scalar_prefetch = 0 : i64, scratch_operands = 0 : i64, tpu.core_type = #tpu.core_type<tc>} {
    %c0 = arith.constant 0 : index
    %c0_0 = arith.constant 0 : index
    %0 = vector.load %arg0[%c0, %c0_0] : memref<8x7xf32, #tpu.memory_space<vmem>>, vector<8x7xf32>
    %c0_1 = arith.constant 0 : index
    %c0_2 = arith.constant 0 : index
    %1 = vector.load %arg1[%c0_1, %c0_2] : memref<7x128xf32, #tpu.memory_space<vmem>>, vector<7x128xf32>
    %cst = arith.constant dense<0.000000e+00> : vector<8x128xf32>
    %2 = tpu.matmul %0, %1, %cst {dimension_numbers = #tpu.dot_dimension_numbers<[1], [0], [0], [1], [0, 0, 1, 1], [], []>} : vector<8x7xf32>, vector<7x128xf32>, vector<8x128xf32> -> vector<8x128xf32>
    %c0_3 = arith.constant 0 : index
    %c0_4 = arith.constant 0 : index
    %3 = vector.load %arg2[%c0_3, %c0_4] : memref<1x128xf32, #tpu.memory_space<vmem>>, vector<1x128xf32>
    %4 = vector.broadcast %3 : vector<1x128xf32> to vector<8x128xf32>
    %5 = arith.addf %2, %4 : vector<8x128xf32>
    %cst_5 = arith.constant 0.000000e+00 : f32
    %6 = vector.broadcast %cst_5 : f32 to vector<8x128xf32>
    %7 = arith.maximumf %5, %6 : vector<8x128xf32>
    %8 = arith.truncf %7 : vector<8x128xf32> to vector<8x128xbf16>
    %c0_6 = arith.constant 0 : index
    %c0_7 = arith.constant 0 : index
    %9 = vector.load %arg3[%c0_6, %c0_7] : memref<128x256xbf16, #tpu.memory_space<vmem>>, vector<128x256xbf16>
    %cst_8 = arith.constant dense<0.000000e+00> : vector<8x256xf32>
    %10 = tpu.matmul %8, %9, %cst_8 {dimension_numbers = #tpu.dot_dimension_numbers<[1], [0], [0], [1], [0, 0, 1, 1], [], []>} : vector<8x128xbf16>, vector<128x256xbf16>, vector<8x256xf32> -> vector<8x256xf32>
    %c0_9 = arith.constant 0 : index
    %c0_10 = arith.constant 0 : index
    %11 = vector.load %arg4[%c0_9, %c0_10] : memref<1x256xf32, #tpu.memory_space<vmem>>, vector<1x256xf32>
    %12 = vector.broadcast %11 : vector<1x256xf32> to vector<8x256xf32>
    %13 = arith.addf %10, %12 : vector<8x256xf32>
    %cst_11 = arith.constant 0.000000e+00 : f32
    %14 = vector.broadcast %cst_11 : f32 to vector<8x256xf32>
    %15 = arith.maximumf %13, %14 : vector<8x256xf32>
    %16 = arith.truncf %15 : vector<8x256xf32> to vector<8x256xbf16>
    %c0_12 = arith.constant 0 : index
    %c0_13 = arith.constant 0 : index
    %17 = vector.load %arg5[%c0_12, %c0_13] : memref<256x2187xbf16, #tpu.memory_space<vmem>>, vector<256x2187xbf16>
    %cst_14 = arith.constant dense<0.000000e+00> : vector<8x2187xf32>
    %18 = tpu.matmul %16, %17, %cst_14 {dimension_numbers = #tpu.dot_dimension_numbers<[1], [0], [0], [1], [0, 0, 1, 1], [], []>} : vector<8x256xbf16>, vector<256x2187xbf16>, vector<8x2187xf32> -> vector<8x2187xf32>
    %c0_15 = arith.constant 0 : index
    %c0_16 = arith.constant 0 : index
    %19 = vector.load %arg6[%c0_15, %c0_16] : memref<1x2187xf32, #tpu.memory_space<vmem>>, vector<1x2187xf32>
    %20 = vector.broadcast %19 : vector<1x2187xf32> to vector<8x2187xf32>
    %21 = arith.addf %18, %20 : vector<8x2187xf32>
    %c0_17 = arith.constant 0 : index
    %c0_18 = arith.constant 0 : index
    %22 = vector.load %arg7[%c0_17, %c0_18] : memref<8x2187xf32, #tpu.memory_space<vmem>>, vector<8x2187xf32>
    tpu.vector_store %arg7[%c0_17, %c0_18], %21 {strides = array<i32>} : memref<8x2187xf32, #tpu.memory_space<vmem>>, vector<8x2187xf32>,
    return
  }
}

</mosaic_0001>

<llo_original>
// kernel: tpu_custom_call.1
$region0: #{tpu_custom_call.1}
  #allocation0 [shape = 'u32[]', space=smem, size = 0x4, offset = 0x4, fixed_abs, tag = 'smem constant byte address 0x4 - core index']
  #allocation1 [shape = 'u32[72,128]{1,0:T(1,128)}', space=vmem, size = 0x9000, scoped, tag = 'internal scratch']
  %s0 = inlined_call_operand.vmem [shape: f32[8,7], index: 0, kind: input, shape index: {}]
  %s1 = inlined_call_operand.vmem [shape: f32[7,128], index: 1, kind: input, shape index: {}]
  %s2 = inlined_call_operand.vmem [shape: f32[1,128], index: 2, kind: input, shape index: {}]
  %s3 = inlined_call_operand.vmem [shape: bf16[128,256], index: 3, kind: input, shape index: {}]
  %s4 = inlined_call_operand.vmem [shape: f32[1,256], index: 4, kind: input, shape index: {}]
  %s5 = inlined_call_operand.vmem [shape: bf16[256,2187], index: 5, kind: input, shape index: {}]
  %s6 = inlined_call_operand.vmem [shape: f32[1,2187], index: 6, kind: input, shape index: {}]
  %s7 = inlined_call_operand.hbm [shape: f32[8,2187], index: 7, kind: output, shape index: {}]
  %s8 = sld [smem:[#allocation0]]
  $region38: #{tpu_custom_call.1} parent=0
    _
  %s10 = ssub.s32 1, %s8
  %s11 = scalar_select 0, %s10, %s8
  $region1: #{tpu_custom_call.1} parent=0
    #allocation2 [shape = 'u8[73728]{0}', space=vmem, size = 0x12000, scoped, tag = 'output window, operand 0, single buffered']
    #allocation3 [shape = 's32[1]{0}', space=sflag, size = 0x4, scoped, tag = 'scoped memory for tpu_custom_call.1']
    %12 = vsyncpa [#allocation3], 0
    // Predicated region
    $region2: #{tpu_custom_call.1} parent=1 // pred_check
      _
    $region3: #{tpu_custom_call.1} parent=1 // pred_check_branch
      %14 = sbr.rel (0) target = $region5
    $region4: #{tpu_custom_call.1} parent=1 // pred_region
      _
    $region5: #{tpu_custom_call.1} parent=1 // pred_fallthru
      _
    // Predicated region
    $region6: #{tpu_custom_call.1} parent=1 // pred_check
      _
    $region7: #{tpu_custom_call.1} parent=1 // pred_check_branch
      %16 = sbr.rel (0) target = $region9
    $region8: #{tpu_custom_call.1} parent=1 // pred_region
      _
    $region9: #{tpu_custom_call.1} parent=1 // pred_fallthru
      _
    // Predicated region
    $region10: #{tpu_custom_call.1} parent=1 // pred_check
      _
    $region11: #{tpu_custom_call.1} parent=1 // pred_check_branch
      %18 = sbr.rel (0) target = $region13
    $region12: #{tpu_custom_call.1} parent=1 // pred_region
      _
    $region13: #{tpu_custom_call.1} parent=1 // pred_fallthru
      _
    // Predicated region
    $region14: #{tpu_custom_call.1} parent=1 // pred_check
      _
    $region15: #{tpu_custom_call.1} parent=1 // pred_check_branch
      %20 = sbr.rel (0) target = $region17
    $region16: #{tpu_custom_call.1} parent=1 // pred_region
      _
    $region17: #{tpu_custom_call.1} parent=1 // pred_fallthru
      _
    // Predicated region
    $region18: #{tpu_custom_call.1} parent=1 // pred_check
      _
    $region19: #{tpu_custom_call.1} parent=1 // pred_check_branch
      %22 = sbr.rel (0) target = $region21
    $region20: #{tpu_custom_call.1} parent=1 // pred_region
      _
    $region21: #{tpu_custom_call.1} parent=1 // pred_fallthru
      _
    // Predicated region
    $region22: #{tpu_custom_call.1} parent=1 // pred_check
      _
    $region23: #{tpu_custom_call.1} parent=1 // pred_check_branch
      %24 = sbr.rel (0) target = $region25
    $region24: #{tpu_custom_call.1} parent=1 // pred_region
      _
    $region25: #{tpu_custom_call.1} parent=1 // pred_fallthru
      _
    // Predicated region
    $region26: #{tpu_custom_call.1} parent=1 // pred_check
      _
    $region27: #{tpu_custom_call.1} parent=1 // pred_check_branch
      %26 = sbr.rel (0) target = $region29
    $region28: #{tpu_custom_call.1} parent=1 // pred_region
      _
    $region29: #{tpu_custom_call.1} parent=1 // pred_fallthru
      _
    %v27 = vld [vmem:[%s0] sm:$0xff]
    %v28 = vld [vmem:[%s1] sm:$0x7f]
    %v29 = vld [vmem:[%s2] sm:$0x1]
    %v31 = vperm.slane %v29, 0
    %vm33 = vcmask 56320
    %v35 = vsel %vm33, %v27, 0
    %vm37 = vcmask 1046528
    %v39 = vsel %vm37, %v28, 0
    %41 = vmatpush.msra.mxu0 0.0
    %42 = vmatpush.msra.mxu0 0.0
    %43 = vmatpush.msra.mxu0 0.0
    %44 = vmatpush.msra.mxu0 0.0
    %45 = vmatpush.msra.mxu0 0.0
    %46 = vmatpush.msra.mxu0 0.0
    %47 = vmatpush.msra.mxu0 0.0
    %48 = vmatpush.msra.mxu0 0.0
    %49 = vmatpush.msra.mxu0 0.0
    %50 = vmatpush.msra.mxu0 0.0
    %51 = vmatpush.msra.mxu0 0.0
    %52 = vmatpush.msra.mxu0 0.0
    %53 = vmatpush.msra.mxu0 0.0
    %54 = vmatpush.msra.mxu0 0.0
    %55 = vmatpush.msra.mxu0 0.0
    %56 = vmatpush.msra.mxu0 %v39
    %57 = vmatmul.f32.gmra.mxu0 %v35
    %v58 = vpop.f32.mrf.mxu0
    %v59 = vadd.f32 %v31, %v58
    %60 = vdwg.mxu0
    %v61 = vmax.f32 %v59, 0.0
    %v62 = vpack.c.bf16 %v61, %v61
    %v63 = vld [vmem:[%s3] sm:$0xff]
    %v64 = vld [vmem:[%s3 + $0x8] sm:$0xff]
    %v65 = vld [vmem:[%s3 + $0x10] sm:$0xff]
    %v66 = vld [vmem:[%s3 + $0x18] sm:$0xff]
    %v67 = vld [vmem:[%s3 + $0x20] sm:$0xff]
    %v68 = vld [vmem:[%s3 + $0x28] sm:$0xff]
    %v69 = vld [vmem:[%s3 + $0x30] sm:$0xff]
    %v70 = vld [vmem:[%s3 + $0x38] sm:$0xff]
    %v71 = vld [vmem:[%s3 + $0x40] sm:$0xff]
    %v72 = vld [vmem:[%s3 + $0x48] sm:$0xff]
    %v73 = vld [vmem:[%s3 + $0x50] sm:$0xff]
    %v74 = vld [vmem:[%s3 + $0x58] sm:$0xff]
    %v75 = vld [vmem:[%s3 + $0x60] sm:$0xff]
    %v76 = vld [vmem:[%s3 + $0x68] sm:$0xff]
    %v77 = vld [vmem:[%s3 + $0x70] sm:$0xff]
    %v78 = vld [vmem:[%s3 + $0x78] sm:$0xff]
    %v79 = vld [vmem:[%s4] sm:$0x3]
    %v81 = vperm.slane %v79, 0
    %v82 = vperm.slane %v79, 1
    %v101 = vunpack.c.l.b16 %v63
    %v102 = vunpack.c.h.b16 %v63
    %v103 = vunpack.c.l.b16 %v64
    %v104 = vunpack.c.h.b16 %v64
    %v105 = vunpack.c.l.b16 %v65
    %v106 = vunpack.c.h.b16 %v65
    %v107 = vunpack.c.l.b16 %v66
    %v108 = vunpack.c.h.b16 %v66
    %v109 = vunpack.c.l.b16 %v67
    %v110 = vunpack.c.h.b16 %v67
    %v111 = vunpack.c.l.b16 %v68
    %v112 = vunpack.c.h.b16 %v68
    %v113 = vunpack.c.l.b16 %v69
    %v114 = vunpack.c.h.b16 %v69
    %v115 = vunpack.c.l.b16 %v70
    %v116 = vunpack.c.h.b16 %v70
    %v117 = vunpack.c.l.b16 %v71
    %v118 = vunpack.c.h.b16 %v71
    %v119 = vunpack.c.l.b16 %v72
    %v120 = vunpack.c.h.b16 %v72
    %v121 = vunpack.c.l.b16 %v73
    %v122 = vunpack.c.h.b16 %v73
    %v123 = vunpack.c.l.b16 %v74
    %v124 = vunpack.c.h.b16 %v74
    %v125 = vunpack.c.l.b16 %v75
    %v126 = vunpack.c.h.b16 %v75
    %v127 = vunpack.c.l.b16 %v76
    %v128 = vunpack.c.h.b16 %v76
    %v129 = vunpack.c.l.b16 %v77
    %v130 = vunpack.c.h.b16 %v77
    %v131 = vunpack.c.l.b16 %v78
    %v132 = vunpack.c.h.b16 %v78
    %v133 = vpack.c.b16 %v103, %v101
    %v134 = vpack.c.b16 %v104, %v102
    %v135 = vpack.c.b16 %v107, %v105
    %v136 = vpack.c.b16 %v108, %v106
    %v137 = vpack.c.b16 %v111, %v109
    %v138 = vpack.c.b16 %v112, %v110
    %v139 = vpack.c.b16 %v115, %v113
    %v140 = vpack.c.b16 %v116, %v114
    %v141 = vpack.c.b16 %v119, %v117
    %v142 = vpack.c.b16 %v120, %v118
    %v143 = vpack.c.b16 %v123, %v121
    %v144 = vpack.c.b16 %v124, %v122
    %v145 = vpack.c.b16 %v127, %v125
    %v146 = vpack.c.b16 %v128, %v126
    %v147 = vpack.c.b16 %v131, %v129
    %v148 = vpack.c.b16 %v132, %v130
    %165 = vmatpush.bf16.msra.mxu0 %v147
    %166 = vmatpush.bf16.msra.mxu0 %v145
    %167 = vmatpush.bf16.msra.mxu0 %v143
    %168 = vmatpush.bf16.msra.mxu0 %v141
    %169 = vmatpush.bf16.msra.mxu0 %v139
    %170 = vmatpush.bf16.msra.mxu0 %v137
    %171 = vmatpush.bf16.msra.mxu0 %v135
    %172 = vmatpush.bf16.msra.mxu0 %v133
    %173 = vmatmul.bf16.gmra.mxu0 %v62
    %v174 = vpop.f32.mrf.mxu0
    %v175 = vadd.f32 %v81, %v174
    %v176 = vpop.f32.mrf.mxu0
    %177 = vdwg.mxu0
    %178 = vmatpush.bf16.msra.mxu0 %v148
    %179 = vmatpush.bf16.msra.mxu0 %v146
    %180 = vmatpush.bf16.msra.mxu0 %v144
    %181 = vmatpush.bf16.msra.mxu0 %v142
    %182 = vmatpush.bf16.msra.mxu0 %v140
    %183 = vmatpush.bf16.msra.mxu0 %v138
    %184 = vmatpush.bf16.msra.mxu0 %v136
    %185 = vmatpush.bf16.msra.mxu0 %v134
    %186 = vmatmul.bf16.gmra.mxu0 %v62
    %v187 = vpop.f32.mrf.mxu0
    %v188 = vadd.f32 %v82, %v187
    %v189 = vpop.f32.mrf.mxu0
    %190 = vdwg.mxu0
    %v191 = vmax.f32 %v175, 0.0
    %v192 = vmax.f32 %v188, 0.0
    %v193 = vpack.c.bf16 %v191, %v191
    %v194 = vpack.c.bf16 %v192, %v192
    %v195 = vld [vmem:[%s5] sm:$0xff]
    %v196 = vld [vmem:[%s5 + $0x8] sm:$0xff]
    %v197 = vld [vmem:[%s5 + $0x10] sm:$0xff]
    %v198 = vld [vmem:[%s5 + $0x18] sm:$0xff]
    %v199 = vld [vmem:[%s5 + $0x20] sm:$0xff]
    %v200 = vld [vmem:[%s5 + $0x28] sm:$0xff]
    %v201 = vld [vmem:[%s5 + $0x30] sm:$0xff]
    %v202 = vld [vmem:[%s5 + $0x38] sm:$0xff]
    %v203 = vld [vmem:[%s5 + $0x40] sm:$0xff]
    %v204 = vld [vmem:[%s5 + $0x48] sm:$0xff]
    %v205 = vld [vmem:[%s5 + $0x50] sm:$0xff]
    %v206 = vld [vmem:[%s5 + $0x58] sm:$0xff]
    %v207 = vld [vmem:[%s5 + $0x60] sm:$0xff]
    %v208 = vld [vmem:[%s5 + $0x68] sm:$0xff]
    %v209 = vld [vmem:[%s5 + $0x70] sm:$0xff]
    %v210 = vld [vmem:[%s5 + $0x78] sm:$0xff]
    %v211 = vld [vmem:[%s5 + $0x80] sm:$0xff]
    %v212 = vld [vmem:[%s5 + $0x88] sm:$0xff]
    %v213 = vld [vmem:[%s5 + $0x90] sm:$0xff]
    %v214 = vld [vmem:[%s5 + $0x98] sm:$0xff]
    %v215 = vld [vmem:[%s5 + $0xa0] sm:$0xff]
    %v216 = vld [vmem:[%s5 + $0xa8] sm:$0xff]
    %v217 = vld [vmem:[%s5 + $0xb0] sm:$0xff]
    %v218 = vld [vmem:[%s5 + $0xb8] sm:$0xff]
    %v219 = vld [vmem:[%s5 + $0xc0] sm:$0xff]
    %v220 = vld [vmem:[%s5 + $0xc8] sm:$0xff]
    %v221 = vld [vmem:[%s5 + $0xd0] sm:$0xff]
    %v222 = vld [vmem:[%s5 + $0xd8] sm:$0xff]
    %v223 = vld [vmem:[%s5 + $0xe0] sm:$0xff]
    %v224 = vld [vmem:[%s5 + $0xe8] sm:$0xff]
    %v225 = vld [vmem:[%s5 + $0xf0] sm:$0xff]
    %v226 = vld [vmem:[%s5 + $0xf8] sm:$0xff]
    %v227 = vld [vmem:[%s5 + $0x100] sm:$0xff]
    %v228 = vld [vmem:[%s5 + $0x108] sm:$0xff]
    %v229 = vld [vmem:[%s5 + $0x110] sm:$0xff]
    %v230 = vld [vmem:[%s5 + $0x118] sm:$0xff]
    %v231 = vld [vmem:[%s5 + $0x120] sm:$0xff]
    %v232 = vld [vmem:[%s5 + $0x128] sm:$0xff]
    %v233 = vld [vmem:[%s5 + $0x130] sm:$0xff]
    %v234 = vld [vmem:[%s5 + $0x138] sm:$0xff]
    %v235 = vld [vmem:[%s5 + $0x140] sm:$0xff]
    %v236 = vld [vmem:[%s5 + $0x148] sm:$0xff]
    %v237 = vld [vmem:[%s5 + $0x150] sm:$0xff]
    %v238 = vld [vmem:[%s5 + $0x158] sm:$0xff]
    %v239 = vld [vmem:[%s5 + $0x160] sm:$0xff]
    %v240 = vld [vmem:[%s5 + $0x168] sm:$0xff]
    %v241 = vld [vmem:[%s5 + $0x170] sm:$0xff]
    %v242 = vld [vmem:[%s5 + $0x178] sm:$0xff]
    %v243 = vld [vmem:[%s5 + $0x180] sm:$0xff]
    %v244 = vld [vmem:[%s5 + $0x188] sm:$0xff]
    %v245 = vld [vmem:[%s5 + $0x190] sm:$0xff]
    %v246 = vld [vmem:[%s5 + $0x198] sm:$0xff]
    %v247 = vld [vmem:[%s5 + $0x1a0] sm:$0xff]
    %v248 = vld [vmem:[%s5 + $0x1a8] sm:$0xff]
    %v249 = vld [vmem:[%s5 + $0x1b0] sm:$0xff]
    %v250 = vld [vmem:[%s5 + $0x1b8] sm:$0xff]
    %v251 = vld [vmem:[%s5 + $0x1c0] sm:$0xff]
    %v252 = vld [vmem:[%s5 + $0x1c8] sm:$0xff]
    %v253 = vld [vmem:[%s5 + $0x1d0] sm:$0xff]
    %v254 = vld [vmem:[%s5 + $0x1d8] sm:$0xff]
    %v255 = vld [vmem:[%s5 + $0x1e0] sm:$0xff]
    %v256 = vld [vmem:[%s5 + $0x1e8] sm:$0xff]
    %v257 = vld [vmem:[%s5 + $0x1f0] sm:$0xff]
    %v258 = vld [vmem:[%s5 + $0x1f8] sm:$0xff]
    %v259 = vld [vmem:[%s5 + $0x200] sm:$0xff]
    %v260 = vld [vmem:[%s5 + $0x208] sm:$0xff]
    %v261 = vld [vmem:[%s5 + $0x210] sm:$0xff]
    %v262 = vld [vmem:[%s5 + $0x218] sm:$0xff]
    %v263 = vld [vmem:[%s5 + $0x220] sm:$0xff]
    %v264 = vld [vmem:[%s5 + $0x228] sm:$0xff]
    %v265 = vld [vmem:[%s5 + $0x230] sm:$0xff]
    %v266 = vld [vmem:[%s5 + $0x238] sm:$0xff]
    %v267 = vld [vmem:[%s5 + $0x240] sm:$0xff]
    %v268 = vld [vmem:[%s5 + $0x248] sm:$0xff]
    %v269 = vld [vmem:[%s5 + $0x250] sm:$0xff]
    %v270 = vld [vmem:[%s5 + $0x258] sm:$0xff]
    %v271 = vld [vmem:[%s5 + $0x260] sm:$0xff]
    %v272 = vld [vmem:[%s5 + $0x268] sm:$0xff]
    %v273 = vld [vmem:[%s5 + $0x270] sm:$0xff]
    %v274 = vld [vmem:[%s5 + $0x278] sm:$0xff]
    %v275 = vld [vmem:[%s5 + $0x280] sm:$0xff]
    %v276 = vld [vmem:[%s5 + $0x288] sm:$0xff]
    %v277 = vld [vmem:[%s5 + $0x290] sm:$0xff]
    %v278 = vld [vmem:[%s5 + $0x298] sm:$0xff]
    %v279 = vld [vmem:[%s5 + $0x2a0] sm:$0xff]
    %v280 = vld [vmem:[%s5 + $0x2a8] sm:$0xff]
    %v281 = vld [vmem:[%s5 + $0x2b0] sm:$0xff]
    %v282 = vld [vmem:[%s5 + $0x2b8] sm:$0xff]
    %v283 = vld [vmem:[%s5 + $0x2c0] sm:$0xff]
    %v284 = vld [vmem:[%s5 + $0x2c8] sm:$0xff]
    %v285 = vld [vmem:[%s5 + $0x2d0] sm:$0xff]
    %v286 = vld [vmem:[%s5 + $0x2d8] sm:$0xff]
    %v287 = vld [vmem:[%s5 + $0x2e0] sm:$0xff]
    %v288 = vld [vmem:[%s5 + $0x2e8] sm:$0xff]
    %v289 = vld [vmem:[%s5 + $0x2f0] sm:$0xff]
    %v290 = vld [vmem:[%s5 + $0x2f8] sm:$0xff]
    %v291 = vld [vmem:[%s5 + $0x300] sm:$0xff]
    %v292 = vld [vmem:[%s5 + $0x308] sm:$0xff]
    %v293 = vld [vmem:[%s5 + $0x310] sm:$0xff]
    %v294 = vld [vmem:[%s5 + $0x318] sm:$0xff]
    %v295 = vld [vmem:[%s5 + $0x320] sm:$0xff]
    %v296 = vld [vmem:[%s5 + $0x328] sm:$0xff]
    %v297 = vld [vmem:[%s5 + $0x330] sm:$0xff]
    %v298 = vld [vmem:[%s5 + $0x338] sm:$0xff]
    %v299 = vld [vmem:[%s5 + $0x340] sm:$0xff]
    %v300 = vld [vmem:[%s5 + $0x348] sm:$0xff]
    %v301 = vld [vmem:[%s5 + $0x350] sm:$0xff]
    %v302 = vld [vmem:[%s5 + $0x358] sm:$0xff]
    %v303 = vld [vmem:[%s5 + $0x360] sm:$0xff]
    %v304 = vld [vmem:[%s5 + $0x368] sm:$0xff]
    %v305 = vld [vmem:[%s5 + $0x370] sm:$0xff]
    %v306 = vld [vmem:[%s5 + $0x378] sm:$0xff]
    %v307 = vld [vmem:[%s5 + $0x380] sm:$0xff]
    %v308 = vld [vmem:[%s5 + $0x388] sm:$0xff]
    %v309 = vld [vmem:[%s5 + $0x390] sm:$0xff]
    %v310 = vld [vmem:[%s5 + $0x398] sm:$0xff]
    %v311 = vld [vmem:[%s5 + $0x3a0] sm:$0xff]
    %v312 = vld [vmem:[%s5 + $0x3a8] sm:$0xff]
    %v313 = vld [vmem:[%s5 + $0x3b0] sm:$0xff]
    %v314 = vld [vmem:[%s5 + $0x3b8] sm:$0xff]
    %v315 = vld [vmem:[%s5 + $0x3c0] sm:$0xff]
    %v316 = vld [vmem:[%s5 + $0x3c8] sm:$0xff]
    %v317 = vld [vmem:[%s5 + $0x3d0] sm:$0xff]
    %v318 = vld [vmem:[%s5 + $0x3d8] sm:$0xff]
    %v319 = vld [vmem:[%s5 + $0x3e0] sm:$0xff]
    %v320 = vld [vmem:[%s5 + $0x3e8] sm:$0xff]
    %v321 = vld [vmem:[%s5 + $0x3f0] sm:$0xff]
    %v322 = vld [vmem:[%s5 + $0x3f8] sm:$0xff]
    %v323 = vld [vmem:[%s5 + $0x400] sm:$0xff]
    %v324 = vld [vmem:[%s5 + $0x408] sm:$0xff]
    %v325 = vld [vmem:[%s5 + $0x410] sm:$0xff]
    %v326 = vld [vmem:[%s5 + $0x418] sm:$0xff]
    %v327 = vld [vmem:[%s5 + $0x420] sm:$0xff]
    %v328 = vld [vmem:[%s5 + $0x428] sm:$0xff]
    %v329 = vld [vmem:[%s5 + $0x430] sm:$0xff]
    %v330 = vld [vmem:[%s5 + $0x438] sm:$0xff]
    %v331 = vld [vmem:[%s5 + $0x440] sm:$0xff]
    %v332 = vld [vmem:[%s5 + $0x448] sm:$0xff]
    %v333 = vld [vmem:[%s5 + $0x450] sm:$0xff]
    %v334 = vld [vmem:[%s5 + $0x458] sm:$0xff]
    %v335 = vld [vmem:[%s5 + $0x460] sm:$0xff]
    %v336 = vld [vmem:[%s5 + $0x468] sm:$0xff]
    %v337 = vld [vmem:[%s5 + $0x470] sm:$0xff]
    %v338 = vld [vmem:[%s5 + $0x478] sm:$0xff]
    %v339 = vld [vmem:[%s5 + $0x480] sm:$0xff]
    %v340 = vld [vmem:[%s5 + $0x488] sm:$0xff]
    %v341 = vld [vmem:[%s5 + $0x490] sm:$0xff]
    %v342 = vld [vmem:[%s5 + $0x498] sm:$0xff]
    %v343 = vld [vmem:[%s5 + $0x4a0] sm:$0xff]
    %v344 = vld [vmem:[%s5 + $0x4a8] sm:$0xff]
    %v345 = vld [vmem:[%s5 + $0x4b0] sm:$0xff]
    %v346 = vld [vmem:[%s5 + $0x4b8] sm:$0xff]
    %v347 = vld [vmem:[%s5 + $0x4c0] sm:$0xff]
    %v348 = vld [vmem:[%s5 + $0x4c8] sm:$0xff]
    %v349 = vld [vmem:[%s5 + $0x4d0] sm:$0xff]
    %v350 = vld [vmem:[%s5 + $0x4d8] sm:$0xff]
    %v351 = vld [vmem:[%s5 + $0x4e0] sm:$0xff]
    %v352 = vld [vmem:[%s5 + $0x4e8] sm:$0xff]
    %v353 = vld [vmem:[%s5 + $0x4f0] sm:$0xff]
    %v354 = vld [vmem:[%s5 + $0x4f8] sm:$0xff]
    %v355 = vld [vmem:[%s5 + $0x500] sm:$0xff]
    %v356 = vld [vmem:[%s5 + $0x508] sm:$0xff]
    %v357 = vld [vmem:[%s5 + $0x510] sm:$0xff]
    %v358 = vld [vmem:[%s5 + $0x518] sm:$0xff]
    %v359 = vld [vmem:[%s5 + $0x520] sm:$0xff]
    %v360 = vld [vmem:[%s5 + $0x528] sm:$0xff]
    %v361 = vld [vmem:[%s5 + $0x530] sm:$0xff]
    %v362 = vld [vmem:[%s5 + $0x538] sm:$0xff]
    %v363 = vld [vmem:[%s5 + $0x540] sm:$0xff]
    %v364 = vld [vmem:[%s5 + $0x548] sm:$0xff]
    %v365 = vld [vmem:[%s5 + $0x550] sm:$0xff]
    %v366 = vld [vmem:[%s5 + $0x558] sm:$0xff]
    %v367 = vld [vmem:[%s5 + $0x560] sm:$0xff]
    %v368 = vld [vmem:[%s5 + $0x568] sm:$0xff]
    %v369 = vld [vmem:[%s5 + $0x570] sm:$0xff]
    %v370 = vld [vmem:[%s5 + $0x578] sm:$0xff]
    %v371 = vld [vmem:[%s5 + $0x580] sm:$0xff]
    %v372 = vld [vmem:[%s5 + $0x588] sm:$0xff]
    %v373 = vld [vmem:[%s5 + $0x590] sm:$0xff]
    %v374 = vld [vmem:[%s5 + $0x598] sm:$0xff]
    %v375 = vld [vmem:[%s5 + $0x5a0] sm:$0xff]
    %v376 = vld [vmem:[%s5 + $0x5a8] sm:$0xff]
    %v377 = vld [vmem:[%s5 + $0x5b0] sm:$0xff]
    %v378 = vld [vmem:[%s5 + $0x5b8] sm:$0xff]
    %v379 = vld [vmem:[%s5 + $0x5c0] sm:$0xff]
    %v380 = vld [vmem:[%s5 + $0x5c8] sm:$0xff]
    %v381 = vld [vmem:[%s5 + $0x5d0] sm:$0xff]
    %v382 = vld [vmem:[%s5 + $0x5d8] sm:$0xff]
    %v383 = vld [vmem:[%s5 + $0x5e0] sm:$0xff]
    %v384 = vld [vmem:[%s5 + $0x5e8] sm:$0xff]
    %v385 = vld [vmem:[%s5 + $0x5f0] sm:$0xff]
    %v386 = vld [vmem:[%s5 + $0x5f8] sm:$0xff]
    %v387 = vld [vmem:[%s5 + $0x600] sm:$0xff]
    %v388 = vld [vmem:[%s5 + $0x608] sm:$0xff]
    %v389 = vld [vmem:[%s5 + $0x610] sm:$0xff]
    %v390 = vld [vmem:[%s5 + $0x618] sm:$0xff]
    %v391 = vld [vmem:[%s5 + $0x620] sm:$0xff]
    %v392 = vld [vmem:[%s5 + $0x628] sm:$0xff]
    %v393 = vld [vmem:[%s5 + $0x630] sm:$0xff]
    %v394 = vld [vmem:[%s5 + $0x638] sm:$0xff]
    %v395 = vld [vmem:[%s5 + $0x640] sm:$0xff]
    %v396 = vld [vmem:[%s5 + $0x648] sm:$0xff]
    %v397 = vld [vmem:[%s5 + $0x650] sm:$0xff]
    %v398 = vld [vmem:[%s5 + $0x658] sm:$0xff]
    %v399 = vld [vmem:[%s5 + $0x660] sm:$0xff]
    %v400 = vld [vmem:[%s5 + $0x668] sm:$0xff]
    %v401 = vld [vmem:[%s5 + $0x670] sm:$0xff]
    %v402 = vld [vmem:[%s5 + $0x678] sm:$0xff]
    %v403 = vld [vmem:[%s5 + $0x680] sm:$0xff]
    %v404 = vld [vmem:[%s5 + $0x688] sm:$0xff]
    %v405 = vld [vmem:[%s5 + $0x690] sm:$0xff]
    %v406 = vld [vmem:[%s5 + $0x698] sm:$0xff]
    %v407 = vld [vmem:[%s5 + $0x6a0] sm:$0xff]
    %v408 = vld [vmem:[%s5 + $0x6a8] sm:$0xff]
    %v409 = vld [vmem:[%s5 + $0x6b0] sm:$0xff]
    %v410 = vld [vmem:[%s5 + $0x6b8] sm:$0xff]
    %v411 = vld [vmem:[%s5 + $0x6c0] sm:$0xff]
    %v412 = vld [vmem:[%s5 + $0x6c8] sm:$0xff]
    %v413 = vld [vmem:[%s5 + $0x6d0] sm:$0xff]
    %v414 = vld [vmem:[%s5 + $0x6d8] sm:$0xff]
    %v415 = vld [vmem:[%s5 + $0x6e0] sm:$0xff]
    %v416 = vld [vmem:[%s5 + $0x6e8] sm:$0xff]
    %v417 = vld [vmem:[%s5 + $0x6f0] sm:$0xff]
    %v418 = vld [vmem:[%s5 + $0x6f8] sm:$0xff]
    %v419 = vld [vmem:[%s5 + $0x700] sm:$0xff]
    %v420 = vld [vmem:[%s5 + $0x708] sm:$0xff]
    %v421 = vld [vmem:[%s5 + $0x710] sm:$0xff]
    %v422 = vld [vmem:[%s5 + $0x718] sm:$0xff]
    %v423 = vld [vmem:[%s5 + $0x720] sm:$0xff]
    %v424 = vld [vmem:[%s5 + $0x728] sm:$0xff]
    %v425 = vld [vmem:[%s5 + $0x730] sm:$0xff]
    %v426 = vld [vmem:[%s5 + $0x738] sm:$0xff]
    %v427 = vld [vmem:[%s5 + $0x740] sm:$0xff]
    %v428 = vld [vmem:[%s5 + $0x748] sm:$0xff]
    %v429 = vld [vmem:[%s5 + $0x750] sm:$0xff]
    %v430 = vld [vmem:[%s5 + $0x758] sm:$0xff]
    %v431 = vld [vmem:[%s5 + $0x760] sm:$0xff]
    %v432 = vld [vmem:[%s5 + $0x768] sm:$0xff]
    %v433 = vld [vmem:[%s5 + $0x770] sm:$0xff]
    %v434 = vld [vmem:[%s5 + $0x778] sm:$0xff]
    %v435 = vld [vmem:[%s5 + $0x780] sm:$0xff]
    %v436 = vld [vmem:[%s5 + $0x788] sm:$0xff]
    %v437 = vld [vmem:[%s5 + $0x790] sm:$0xff]
    %v438 = vld [vmem:[%s5 + $0x798] sm:$0xff]
    %v439 = vld [vmem:[%s5 + $0x7a0] sm:$0xff]
    %v440 = vld [vmem:[%s5 + $0x7a8] sm:$0xff]
    %v441 = vld [vmem:[%s5 + $0x7b0] sm:$0xff]
    %v442 = vld [vmem:[%s5 + $0x7b8] sm:$0xff]
    %v443 = vld [vmem:[%s5 + $0x7c0] sm:$0xff]
    %v444 = vld [vmem:[%s5 + $0x7c8] sm:$0xff]
    %v445 = vld [vmem:[%s5 + $0x7d0] sm:$0xff]
    %v446 = vld [vmem:[%s5 + $0x7d8] sm:$0xff]
    %v447 = vld [vmem:[%s5 + $0x7e0] sm:$0xff]
    %v448 = vld [vmem:[%s5 + $0x7e8] sm:$0xff]
    %v449 = vld [vmem:[%s5 + $0x7f0] sm:$0xff]
    %v450 = vld [vmem:[%s5 + $0x7f8] sm:$0xff]
    %v451 = vld [vmem:[%s5 + $0x800] sm:$0xff]
    %v452 = vld [vmem:[%s5 + $0x808] sm:$0xff]
    %v453 = vld [vmem:[%s5 + $0x810] sm:$0xff]
    %v454 = vld [vmem:[%s5 + $0x818] sm:$0xff]
    %v455 = vld [vmem:[%s5 + $0x820] sm:$0xff]
    %v456 = vld [vmem:[%s5 + $0x828] sm:$0xff]
    %v457 = vld [vmem:[%s5 + $0x830] sm:$0xff]
    %v458 = vld [vmem:[%s5 + $0x838] sm:$0xff]
    %v459 = vld [vmem:[%s5 + $0x840] sm:$0xff]
    %v460 = vld [vmem:[%s5 + $0x848] sm:$0xff]
    %v461 = vld [vmem:[%s5 + $0x850] sm:$0xff]
    %v462 = vld [vmem:[%s5 + $0x858] sm:$0xff]
    %v463 = vld [vmem:[%s5 + $0x860] sm:$0xff]
    %v464 = vld [vmem:[%s5 + $0x868] sm:$0xff]
    %v465 = vld [vmem:[%s5 + $0x870] sm:$0xff]
    %v466 = vld [vmem:[%s5 + $0x878] sm:$0xff]
    %v467 = vld [vmem:[%s5 + $0x880] sm:$0xff]
    %v468 = vld [vmem:[%s5 + $0x888] sm:$0xff]
    %v469 = vld [vmem:[%s5 + $0x890] sm:$0xff]
    %v470 = vld [vmem:[%s5 + $0x898] sm:$0xff]
    %v471 = vld [vmem:[%s5 + $0x8a0] sm:$0xff]
    %v472 = vld [vmem:[%s5 + $0x8a8] sm:$0xff]
    %v473 = vld [vmem:[%s5 + $0x8b0] sm:$0xff]
    %v474 = vld [vmem:[%s5 + $0x8b8] sm:$0xff]
    %v475 = vld [vmem:[%s5 + $0x8c0] sm:$0xff]
    %v476 = vld [vmem:[%s5 + $0x8c8] sm:$0xff]
    %v477 = vld [vmem:[%s5 + $0x8d0] sm:$0xff]
    %v478 = vld [vmem:[%s5 + $0x8d8] sm:$0xff]
    %v479 = vld [vmem:[%s5 + $0x8e0] sm:$0xff]
    %v480 = vld [vmem:[%s5 + $0x8e8] sm:$0xff]
    %v481 = vld [vmem:[%s5 + $0x8f0] sm:$0xff]
    %v482 = vld [vmem:[%s5 + $0x8f8] sm:$0xff]
    %v483 = vld [vmem:[%s6] sm:$0xff]
    %v484 = vld [vmem:[%s6 + $0x8] sm:$0xff]
    %v485 = vld [vmem:[%s6 + $0x10] sm:$0x3]
    %v489 = vperm.slane %v483, 0
    %v490 = vperm.slane %v483, 1
    %v491 = vperm.slane %v483, 2
    %v492 = vperm.slane %v483, 3
    %v493 = vperm.slane %v483, 4
    %v494 = vperm.slane %v483, 5
    %v495 = vperm.slane %v483, 6
    %v496 = vperm.slane %v483, 7
    %v497 = vperm.slane %v484, 0
    %v498 = vperm.slane %v484, 1
    %v499 = vperm.slane %v484, 2
    %v500 = vperm.slane %v484, 3
    %v501 = vperm.slane %v484, 4
    %v502 = vperm.slane %v484, 5
    %v503 = vperm.slane %v484, 6
    %v504 = vperm.slane %v484, 7
    %v505 = vperm.slane %v485, 0
    %v506 = vperm.slane %v485, 1
    %v813 = vunpack.c.l.b16 %v195
    %v814 = vunpack.c.h.b16 %v195
    %v815 = vunpack.c.l.b16 %v196
    %v816 = vunpack.c.h.b16 %v196
    %v817 = vunpack.c.l.b16 %v197
    %v818 = vunpack.c.h.b16 %v197
    %v819 = vunpack.c.l.b16 %v198
    %v820 = vunpack.c.h.b16 %v198
    %v821 = vunpack.c.l.b16 %v199
    %v822 = vunpack.c.h.b16 %v199
    %v823 = vunpack.c.l.b16 %v200
    %v824 = vunpack.c.h.b16 %v200
    %v825 = vunpack.c.l.b16 %v201
    %v826 = vunpack.c.h.b16 %v201
    %v827 = vunpack.c.l.b16 %v202
    %v828 = vunpack.c.h.b16 %v202
    %v829 = vunpack.c.l.b16 %v203
    %v830 = vunpack.c.h.b16 %v203
    %v831 = vunpack.c.l.b16 %v204
    %v832 = vunpack.c.h.b16 %v204
    %v833 = vunpack.c.l.b16 %v205
    %v834 = vunpack.c.h.b16 %v205
    %v835 = vunpack.c.l.b16 %v206
    %v836 = vunpack.c.h.b16 %v206
    %v837 = vunpack.c.l.b16 %v207
    %v838 = vunpack.c.h.b16 %v207
    %v839 = vunpack.c.l.b16 %v208
    %v840 = vunpack.c.h.b16 %v208
    %v841 = vunpack.c.l.b16 %v209
    %v842 = vunpack.c.h.b16 %v209
    %v843 = vunpack.c.l.b16 %v210
    %v844 = vunpack.c.h.b16 %v210
    %v845 = vunpack.c.l.b16 %v211
    %v846 = vunpack.c.h.b16 %v211
    %v847 = vunpack.c.l.b16 %v212
    %v848 = vunpack.c.h.b16 %v212
    %v849 = vunpack.c.l.b16 %v213
    %v850 = vunpack.c.h.b16 %v213
    %v851 = vunpack.c.l.b16 %v214
    %v852 = vunpack.c.h.b16 %v214
    %v853 = vunpack.c.l.b16 %v215
    %v854 = vunpack.c.h.b16 %v215
    %v855 = vunpack.c.l.b16 %v216
    %v856 = vunpack.c.h.b16 %v216
    %v857 = vunpack.c.l.b16 %v217
    %v858 = vunpack.c.h.b16 %v217
    %v859 = vunpack.c.l.b16 %v218
    %v860 = vunpack.c.h.b16 %v218
    %v861 = vunpack.c.l.b16 %v219
    %v862 = vunpack.c.h.b16 %v219
    %v863 = vunpack.c.l.b16 %v220
    %v864 = vunpack.c.h.b16 %v220
    %v865 = vunpack.c.l.b16 %v221
    %v866 = vunpack.c.h.b16 %v221
    %v867 = vunpack.c.l.b16 %v222
    %v868 = vunpack.c.h.b16 %v222
    %v869 = vunpack.c.l.b16 %v223
    %v870 = vunpack.c.h.b16 %v223
    %v871 = vunpack.c.l.b16 %v224
    %v872 = vunpack.c.h.b16 %v224
    %v873 = vunpack.c.l.b16 %v225
    %v874 = vunpack.c.h.b16 %v225
    %v875 = vunpack.c.l.b16 %v226
    %v876 = vunpack.c.h.b16 %v226
    %v877 = vunpack.c.l.b16 %v227
    %v878 = vunpack.c.h.b16 %v227
    %v879 = vunpack.c.l.b16 %v228
    %v880 = vunpack.c.h.b16 %v228
    %v881 = vunpack.c.l.b16 %v229
    %v882 = vunpack.c.h.b16 %v229
    %v883 = vunpack.c.l.b16 %v230
    %v884 = vunpack.c.h.b16 %v230
    %v885 = vunpack.c.l.b16 %v231
    %v886 = vunpack.c.h.b16 %v231
    %v887 = vunpack.c.l.b16 %v232
    %v888 = vunpack.c.h.b16 %v232
    %v889 = vunpack.c.l.b16 %v233
    %v890 = vunpack.c.h.b16 %v233
    %v891 = vunpack.c.l.b16 %v234
    %v892 = vunpack.c.h.b16 %v234
    %v893 = vunpack.c.l.b16 %v235
    %v894 = vunpack.c.h.b16 %v235
    %v895 = vunpack.c.l.b16 %v236
    %v896 = vunpack.c.h.b16 %v236
    %v897 = vunpack.c.l.b16 %v237
    %v898 = vunpack.c.h.b16 %v237
    %v899 = vunpack.c.l.b16 %v238
    %v900 = vunpack.c.h.b16 %v238
    %v901 = vunpack.c.l.b16 %v239
    %v902 = vunpack.c.h.b16 %v239
    %v903 = vunpack.c.l.b16 %v240
    %v904 = vunpack.c.h.b16 %v240
    %v905 = vunpack.c.l.b16 %v241
    %v906 = vunpack.c.h.b16 %v241
    %v907 = vunpack.c.l.b16 %v242
    %v908 = vunpack.c.h.b16 %v242
    %v909 = vunpack.c.l.b16 %v243
    %v910 = vunpack.c.h.b16 %v243
    %v911 = vunpack.c.l.b16 %v244
    %v912 = vunpack.c.h.b16 %v244
    %v913 = vunpack.c.l.b16 %v245
    %v914 = vunpack.c.h.b16 %v245
    %v915 = vunpack.c.l.b16 %v246
    %v916 = vunpack.c.h.b16 %v246
    %v917 = vunpack.c.l.b16 %v247
    %v918 = vunpack.c.h.b16 %v247
    %v919 = vunpack.c.l.b16 %v248
    %v920 = vunpack.c.h.b16 %v248
    %v921 = vunpack.c.l.b16 %v249
    %v922 = vunpack.c.h.b16 %v249
    %v923 = vunpack.c.l.b16 %v250
    %v924 = vunpack.c.h.b16 %v250
    %v925 = vunpack.c.l.b16 %v251
    %v926 = vunpack.c.h.b16 %v251
    %v927 = vunpack.c.l.b16 %v252
    %v928 = vunpack.c.h.b16 %v252
    %v929 = vunpack.c.l.b16 %v253
    %v930 = vunpack.c.h.b16 %v253
    %v931 = vunpack.c.l.b16 %v254
    %v932 = vunpack.c.h.b16 %v254
    %v933 = vunpack.c.l.b16 %v255
    %v934 = vunpack.c.h.b16 %v255
    %v935 = vunpack.c.l.b16 %v256
    %v936 = vunpack.c.h.b16 %v256
    %v937 = vunpack.c.l.b16 %v257
    %v938 = vunpack.c.h.b16 %v257
    %v939 = vunpack.c.l.b16 %v258
    %v940 = vunpack.c.h.b16 %v258
    %v941 = vunpack.c.l.b16 %v259
    %v942 = vunpack.c.h.b16 %v259
    %v943 = vunpack.c.l.b16 %v260
    %v944 = vunpack.c.h.b16 %v260
    %v945 = vunpack.c.l.b16 %v261
    %v946 = vunpack.c.h.b16 %v261
    %v947 = vunpack.c.l.b16 %v262
    %v948 = vunpack.c.h.b16 %v262
    %v949 = vunpack.c.l.b16 %v263
    %v950 = vunpack.c.h.b16 %v263
    %v951 = vunpack.c.l.b16 %v264
    %v952 = vunpack.c.h.b16 %v264
    %v953 = vunpack.c.l.b16 %v265
    %v954 = vunpack.c.h.b16 %v265
    %v955 = vunpack.c.l.b16 %v266
    %v956 = vunpack.c.h.b16 %v266
    %v957 = vunpack.c.l.b16 %v267
    %v958 = vunpack.c.h.b16 %v267
    %v959 = vunpack.c.l.b16 %v268
    %v960 = vunpack.c.h.b16 %v268
    %v961 = vunpack.c.l.b16 %v269
    %v962 = vunpack.c.h.b16 %v269
    %v963 = vunpack.c.l.b16 %v270
    %v964 = vunpack.c.h.b16 %v270
    %v965 = vunpack.c.l.b16 %v271
    %v966 = vunpack.c.h.b16 %v271
    %v967 = vunpack.c.l.b16 %v272
    %v968 = vunpack.c.h.b16 %v272
    %v969 = vunpack.c.l.b16 %v273
    %v970 = vunpack.c.h.b16 %v273
    %v971 = vunpack.c.l.b16 %v274
    %v972 = vunpack.c.h.b16 %v274
    %v973 = vunpack.c.l.b16 %v275
    %v974 = vunpack.c.h.b16 %v275
    %v975 = vunpack.c.l.b16 %v276
    %v976 = vunpack.c.h.b16 %v276
    %v977 = vunpack.c.l.b16 %v277
    %v978 = vunpack.c.h.b16 %v277
    %v979 = vunpack.c.l.b16 %v278
    %v980 = vunpack.c.h.b16 %v278
    %v981 = vunpack.c.l.b16 %v279
    %v982 = vunpack.c.h.b16 %v279
    %v983 = vunpack.c.l.b16 %v280
    %v984 = vunpack.c.h.b16 %v280
    %v985 = vunpack.c.l.b16 %v281
    %v986 = vunpack.c.h.b16 %v281
    %v987 = vunpack.c.l.b16 %v282
    %v988 = vunpack.c.h.b16 %v282
    %v989 = vunpack.c.l.b16 %v283
    %v990 = vunpack.c.h.b16 %v283
    %v991 = vunpack.c.l.b16 %v284
    %v992 = vunpack.c.h.b16 %v284
    %v993 = vunpack.c.l.b16 %v285
    %v994 = vunpack.c.h.b16 %v285
    %v995 = vunpack.c.l.b16 %v286
    %v996 = vunpack.c.h.b16 %v286
    %v997 = vunpack.c.l.b16 %v287
    %v998 = vunpack.c.h.b16 %v287
    %v999 = vunpack.c.l.b16 %v288
    %v1000 = vunpack.c.h.b16 %v288
    %v1001 = vunpack.c.l.b16 %v289
    %v1002 = vunpack.c.h.b16 %v289
    %v1003 = vunpack.c.l.b16 %v290
    %v1004 = vunpack.c.h.b16 %v290
    %v1005 = vunpack.c.l.b16 %v291
    %v1006 = vunpack.c.h.b16 %v291
    %v1007 = vunpack.c.l.b16 %v292
    %v1008 = vunpack.c.h.b16 %v292
    %v1009 = vunpack.c.l.b16 %v293
    %v1010 = vunpack.c.h.b16 %v293
    %v1011 = vunpack.c.l.b16 %v294
    %v1012 = vunpack.c.h.b16 %v294
    %v1013 = vunpack.c.l.b16 %v295
    %v1014 = vunpack.c.h.b16 %v295
    %v1015 = vunpack.c.l.b16 %v296
    %v1016 = vunpack.c.h.b16 %v296
    %v1017 = vunpack.c.l.b16 %v297
    %v1018 = vunpack.c.h.b16 %v297
    %v1019 = vunpack.c.l.b16 %v298
    %v1020 = vunpack.c.h.b16 %v298
    %v1021 = vunpack.c.l.b16 %v299
    %v1022 = vunpack.c.h.b16 %v299
    %v1023 = vunpack.c.l.b16 %v300
    %v1024 = vunpack.c.h.b16 %v300
    %v1025 = vunpack.c.l.b16 %v301
    %v1026 = vunpack.c.h.b16 %v301
    %v1027 = vunpack.c.l.b16 %v302
    %v1028 = vunpack.c.h.b16 %v302
    %v1029 = vunpack.c.l.b16 %v303
    %v1030 = vunpack.c.h.b16 %v303
    %v1031 = vunpack.c.l.b16 %v304
    %v1032 = vunpack.c.h.b16 %v304
    %v1033 = vunpack.c.l.b16 %v305
    %v1034 = vunpack.c.h.b16 %v305
    %v1035 = vunpack.c.l.b16 %v306
    %v1036 = vunpack.c.h.b16 %v306
    %v1037 = vunpack.c.l.b16 %v307
    %v1038 = vunpack.c.h.b16 %v307
    %v1039 = vunpack.c.l.b16 %v308
    %v1040 = vunpack.c.h.b16 %v308
    %v1041 = vunpack.c.l.b16 %v309
    %v1042 = vunpack.c.h.b16 %v309
    %v1043 = vunpack.c.l.b16 %v310
    %v1044 = vunpack.c.h.b16 %v310
    %v1045 = vunpack.c.l.b16 %v311
    %v1046 = vunpack.c.h.b16 %v311
    %v1047 = vunpack.c.l.b16 %v312
    %v1048 = vunpack.c.h.b16 %v312
    %v1049 = vunpack.c.l.b16 %v313
    %v1050 = vunpack.c.h.b16 %v313
    %v1051 = vunpack.c.l.b16 %v314
    %v1052 = vunpack.c.h.b16 %v314
    %v1053 = vunpack.c.l.b16 %v315
    %v1054 = vunpack.c.h.b16 %v315
    %v1055 = vunpack.c.l.b16 %v316
    %v1056 = vunpack.c.h.b16 %v316
    %v1057 = vunpack.c.l.b16 %v317
    %v1058 = vunpack.c.h.b16 %v317
    %v1059 = vunpack.c.l.b16 %v318
    %v1060 = vunpack.c.h.b16 %v318
    %v1061 = vunpack.c.l.b16 %v319
    %v1062 = vunpack.c.h.b16 %v319
    %v1063 = vunpack.c.l.b16 %v320
    %v1064 = vunpack.c.h.b16 %v320
    %v1065 = vunpack.c.l.b16 %v321
    %v1066 = vunpack.c.h.b16 %v321
    %v1067 = vunpack.c.l.b16 %v322
    %v1068 = vunpack.c.h.b16 %v322
    %v1069 = vunpack.c.l.b16 %v323
    %v1070 = vunpack.c.h.b16 %v323
    %v1071 = vunpack.c.l.b16 %v324
    %v1072 = vunpack.c.h.b16 %v324
    %v1073 = vunpack.c.l.b16 %v325
    %v1074 = vunpack.c.h.b16 %v325
    %v1075 = vunpack.c.l.b16 %v326
    %v1076 = vunpack.c.h.b16 %v326
    %v1077 = vunpack.c.l.b16 %v327
    %v1078 = vunpack.c.h.b16 %v327
    %v1079 = vunpack.c.l.b16 %v328
    %v1080 = vunpack.c.h.b16 %v328
    %v1081 = vunpack.c.l.b16 %v329
    %v1082 = vunpack.c.h.b16 %v329
    %v1083 = vunpack.c.l.b16 %v330
    %v1084 = vunpack.c.h.b16 %v330
    %v1085 = vunpack.c.l.b16 %v331
    %v1086 = vunpack.c.h.b16 %v331
    %v1087 = vunpack.c.l.b16 %v332
    %v1088 = vunpack.c.h.b16 %v332
    %v1089 = vunpack.c.l.b16 %v333
    %v1090 = vunpack.c.h.b16 %v333
    %v1091 = vunpack.c.l.b16 %v334
    %v1092 = vunpack.c.h.b16 %v334
    %v1093 = vunpack.c.l.b16 %v335
    %v1094 = vunpack.c.h.b16 %v335
    %v1095 = vunpack.c.l.b16 %v336
    %v1096 = vunpack.c.h.b16 %v336
    %v1097 = vunpack.c.l.b16 %v337
    %v1098 = vunpack.c.h.b16 %v337
    %v1099 = vunpack.c.l.b16 %v338
    %v1100 = vunpack.c.h.b16 %v338
    %v1101 = vunpack.c.l.b16 %v339
    %v1102 = vunpack.c.h.b16 %v339
    %v1103 = vunpack.c.l.b16 %v340
    %v1104 = vunpack.c.h.b16 %v340
    %v1105 = vunpack.c.l.b16 %v341
    %v1106 = vunpack.c.h.b16 %v341
    %v1107 = vunpack.c.l.b16 %v342
    %v1108 = vunpack.c.h.b16 %v342
    %v1109 = vunpack.c.l.b16 %v343
    %v1110 = vunpack.c.h.b16 %v343
    %v1111 = vunpack.c.l.b16 %v344
    %v1112 = vunpack.c.h.b16 %v344
    %v1113 = vunpack.c.l.b16 %v345
    %v1114 = vunpack.c.h.b16 %v345
    %v1115 = vunpack.c.l.b16 %v346
    %v1116 = vunpack.c.h.b16 %v346
    %v1117 = vunpack.c.l.b16 %v347
    %v1118 = vunpack.c.h.b16 %v347
    %v1119 = vunpack.c.l.b16 %v348
    %v1120 = vunpack.c.h.b16 %v348
    %v1121 = vunpack.c.l.b16 %v349
    %v1122 = vunpack.c.h.b16 %v349
    %v1123 = vunpack.c.l.b16 %v350
    %v1124 = vunpack.c.h.b16 %v350
    %v1125 = vunpack.c.l.b16 %v351
    %v1126 = vunpack.c.h.b16 %v351
    %v1127 = vunpack.c.l.b16 %v352
    %v1128 = vunpack.c.h.b16 %v352
    %v1129 = vunpack.c.l.b16 %v353
    %v1130 = vunpack.c.h.b16 %v353
    %v1131 = vunpack.c.l.b16 %v354
    %v1132 = vunpack.c.h.b16 %v354
    %v1133 = vunpack.c.l.b16 %v355
    %v1134 = vunpack.c.h.b16 %v355
    %v1135 = vunpack.c.l.b16 %v356
    %v1136 = vunpack.c.h.b16 %v356
    %v1137 = vunpack.c.l.b16 %v357
    %v1138 = vunpack.c.h.b16 %v357
    %v1139 = vunpack.c.l.b16 %v358
    %v1140 = vunpack.c.h.b16 %v358
    %v1141 = vunpack.c.l.b16 %v359
    %v1142 = vunpack.c.h.b16 %v359
    %v1143 = vunpack.c.l.b16 %v360
    %v1144 = vunpack.c.h.b16 %v360
    %v1145 = vunpack.c.l.b16 %v361
    %v1146 = vunpack.c.h.b16 %v361
    %v1147 = vunpack.c.l.b16 %v362
    %v1148 = vunpack.c.h.b16 %v362
    %v1149 = vunpack.c.l.b16 %v363
    %v1150 = vunpack.c.h.b16 %v363
    %v1151 = vunpack.c.l.b16 %v364
    %v1152 = vunpack.c.h.b16 %v364
    %v1153 = vunpack.c.l.b16 %v365
    %v1154 = vunpack.c.h.b16 %v365
    %v1155 = vunpack.c.l.b16 %v366
    %v1156 = vunpack.c.h.b16 %v366
    %v1157 = vunpack.c.l.b16 %v367
    %v1158 = vunpack.c.h.b16 %v367
    %v1159 = vunpack.c.l.b16 %v368
    %v1160 = vunpack.c.h.b16 %v368
    %v1161 = vunpack.c.l.b16 %v369
    %v1162 = vunpack.c.h.b16 %v369
    %v1163 = vunpack.c.l.b16 %v370
    %v1164 = vunpack.c.h.b16 %v370
    %v1165 = vunpack.c.l.b16 %v371
    %v1166 = vunpack.c.h.b16 %v371
    %v1167 = vunpack.c.l.b16 %v372
    %v1168 = vunpack.c.h.b16 %v372
    %v1169 = vunpack.c.l.b16 %v373
    %v1170 = vunpack.c.h.b16 %v373
    %v1171 = vunpack.c.l.b16 %v374
    %v1172 = vunpack.c.h.b16 %v374
    %v1173 = vunpack.c.l.b16 %v375
    %v1174 = vunpack.c.h.b16 %v375
    %v1175 = vunpack.c.l.b16 %v376
    %v1176 = vunpack.c.h.b16 %v376
    %v1177 = vunpack.c.l.b16 %v377
    %v1178 = vunpack.c.h.b16 %v377
    %v1179 = vunpack.c.l.b16 %v378
    %v1180 = vunpack.c.h.b16 %v378
    %v1181 = vunpack.c.l.b16 %v379
    %v1182 = vunpack.c.h.b16 %v379
    %v1183 = vunpack.c.l.b16 %v380
    %v1184 = vunpack.c.h.b16 %v380
    %v1185 = vunpack.c.l.b16 %v381
    %v1186 = vunpack.c.h.b16 %v381
    %v1187 = vunpack.c.l.b16 %v382
    %v1188 = vunpack.c.h.b16 %v382
    %v1189 = vunpack.c.l.b16 %v383
    %v1190 = vunpack.c.h.b16 %v383
    %v1191 = vunpack.c.l.b16 %v384
    %v1192 = vunpack.c.h.b16 %v384
    %v1193 = vunpack.c.l.b16 %v385
    %v1194 = vunpack.c.h.b16 %v385
    %v1195 = vunpack.c.l.b16 %v386
    %v1196 = vunpack.c.h.b16 %v386
    %v1197 = vunpack.c.l.b16 %v387
    %v1198 = vunpack.c.h.b16 %v387
    %v1199 = vunpack.c.l.b16 %v388
    %v1200 = vunpack.c.h.b16 %v388
    %v1201 = vunpack.c.l.b16 %v389
    %v1202 = vunpack.c.h.b16 %v389
    %v1203 = vunpack.c.l.b16 %v390
    %v1204 = vunpack.c.h.b16 %v390
    %v1205 = vunpack.c.l.b16 %v391
    %v1206 = vunpack.c.h.b16 %v391
    %v1207 = vunpack.c.l.b16 %v392
    %v1208 = vunpack.c.h.b16 %v392
    %v1209 = vunpack.c.l.b16 %v393
    %v1210 = vunpack.c.h.b16 %v393
    %v1211 = vunpack.c.l.b16 %v394
    %v1212 = vunpack.c.h.b16 %v394
    %v1213 = vunpack.c.l.b16 %v395
    %v1214 = vunpack.c.h.b16 %v395
    %v1215 = vunpack.c.l.b16 %v396
    %v1216 = vunpack.c.h.b16 %v396
    %v1217 = vunpack.c.l.b16 %v397
    %v1218 = vunpack.c.h.b16 %v397
    %v1219 = vunpack.c.l.b16 %v398
    %v1220 = vunpack.c.h.b16 %v398
    %v1221 = vunpack.c.l.b16 %v399
    %v1222 = vunpack.c.h.b16 %v399
    %v1223 = vunpack.c.l.b16 %v400
    %v1224 = vunpack.c.h.b16 %v400
    %v1225 = vunpack.c.l.b16 %v401
    %v1226 = vunpack.c.h.b16 %v401
    %v1227 = vunpack.c.l.b16 %v402
    %v1228 = vunpack.c.h.b16 %v402
    %v1229 = vunpack.c.l.b16 %v403
    %v1230 = vunpack.c.h.b16 %v403
    %v1231 = vunpack.c.l.b16 %v404
    %v1232 = vunpack.c.h.b16 %v404
    %v1233 = vunpack.c.l.b16 %v405
    %v1234 = vunpack.c.h.b16 %v405
    %v1235 = vunpack.c.l.b16 %v406
    %v1236 = vunpack.c.h.b16 %v406
    %v1237 = vunpack.c.l.b16 %v407
    %v1238 = vunpack.c.h.b16 %v407
    %v1239 = vunpack.c.l.b16 %v408
    %v1240 = vunpack.c.h.b16 %v408
    %v1241 = vunpack.c.l.b16 %v409
    %v1242 = vunpack.c.h.b16 %v409
    %v1243 = vunpack.c.l.b16 %v410
    %v1244 = vunpack.c.h.b16 %v410
    %v1245 = vunpack.c.l.b16 %v411
    %v1246 = vunpack.c.h.b16 %v411
    %v1247 = vunpack.c.l.b16 %v412
    %v1248 = vunpack.c.h.b16 %v412
    %v1249 = vunpack.c.l.b16 %v413
    %v1250 = vunpack.c.h.b16 %v413
    %v1251 = vunpack.c.l.b16 %v414
    %v1252 = vunpack.c.h.b16 %v414
    %v1253 = vunpack.c.l.b16 %v415
    %v1254 = vunpack.c.h.b16 %v415
    %v1255 = vunpack.c.l.b16 %v416
    %v1256 = vunpack.c.h.b16 %v416
    %v1257 = vunpack.c.l.b16 %v417
    %v1258 = vunpack.c.h.b16 %v417
    %v1259 = vunpack.c.l.b16 %v418
    %v1260 = vunpack.c.h.b16 %v418
    %v1261 = vunpack.c.l.b16 %v419
    %v1262 = vunpack.c.h.b16 %v419
    %v1263 = vunpack.c.l.b16 %v420
    %v1264 = vunpack.c.h.b16 %v420
    %v1265 = vunpack.c.l.b16 %v421
    %v1266 = vunpack.c.h.b16 %v421
    %v1267 = vunpack.c.l.b16 %v422
    %v1268 = vunpack.c.h.b16 %v422
    %v1269 = vunpack.c.l.b16 %v423
    %v1270 = vunpack.c.h.b16 %v423
    %v1271 = vunpack.c.l.b16 %v424
    %v1272 = vunpack.c.h.b16 %v424
    %v1273 = vunpack.c.l.b16 %v425
    %v1274 = vunpack.c.h.b16 %v425
    %v1275 = vunpack.c.l.b16 %v426
    %v1276 = vunpack.c.h.b16 %v426
    %v1277 = vunpack.c.l.b16 %v427
    %v1278 = vunpack.c.h.b16 %v427
    %v1279 = vunpack.c.l.b16 %v428
    %v1280 = vunpack.c.h.b16 %v428
    %v1281 = vunpack.c.l.b16 %v429
    %v1282 = vunpack.c.h.b16 %v429
    %v1283 = vunpack.c.l.b16 %v430
    %v1284 = vunpack.c.h.b16 %v430
    %v1285 = vunpack.c.l.b16 %v431
    %v1286 = vunpack.c.h.b16 %v431
    %v1287 = vunpack.c.l.b16 %v432
    %v1288 = vunpack.c.h.b16 %v432
    %v1289 = vunpack.c.l.b16 %v433
    %v1290 = vunpack.c.h.b16 %v433
    %v1291 = vunpack.c.l.b16 %v434
    %v1292 = vunpack.c.h.b16 %v434
    %v1293 = vunpack.c.l.b16 %v435
    %v1294 = vunpack.c.h.b16 %v435
    %v1295 = vunpack.c.l.b16 %v436
    %v1296 = vunpack.c.h.b16 %v436
    %v1297 = vunpack.c.l.b16 %v437
    %v1298 = vunpack.c.h.b16 %v437
    %v1299 = vunpack.c.l.b16 %v438
    %v1300 = vunpack.c.h.b16 %v438
    %v1301 = vunpack.c.l.b16 %v439
    %v1302 = vunpack.c.h.b16 %v439
    %v1303 = vunpack.c.l.b16 %v440
    %v1304 = vunpack.c.h.b16 %v440
    %v1305 = vunpack.c.l.b16 %v441
    %v1306 = vunpack.c.h.b16 %v441
    %v1307 = vunpack.c.l.b16 %v442
    %v1308 = vunpack.c.h.b16 %v442
    %v1309 = vunpack.c.l.b16 %v443
    %v1310 = vunpack.c.h.b16 %v443
    %v1311 = vunpack.c.l.b16 %v444
    %v1312 = vunpack.c.h.b16 %v444
    %v1313 = vunpack.c.l.b16 %v445
    %v1314 = vunpack.c.h.b16 %v445
    %v1315 = vunpack.c.l.b16 %v446
    %v1316 = vunpack.c.h.b16 %v446
    %v1317 = vunpack.c.l.b16 %v447
    %v1318 = vunpack.c.h.b16 %v447
    %v1319 = vunpack.c.l.b16 %v448
    %v1320 = vunpack.c.h.b16 %v448
    %v1321 = vunpack.c.l.b16 %v449
    %v1322 = vunpack.c.h.b16 %v449
    %v1323 = vunpack.c.l.b16 %v450
    %v1324 = vunpack.c.h.b16 %v450
    %v1325 = vunpack.c.l.b16 %v451
    %v1326 = vunpack.c.h.b16 %v451
    %v1327 = vunpack.c.l.b16 %v452
    %v1328 = vunpack.c.h.b16 %v452
    %v1329 = vunpack.c.l.b16 %v453
    %v1330 = vunpack.c.h.b16 %v453
    %v1331 = vunpack.c.l.b16 %v454
    %v1332 = vunpack.c.h.b16 %v454
    %v1333 = vunpack.c.l.b16 %v455
    %v1334 = vunpack.c.h.b16 %v455
    %v1335 = vunpack.c.l.b16 %v456
    %v1336 = vunpack.c.h.b16 %v456
    %v1337 = vunpack.c.l.b16 %v457
    %v1338 = vunpack.c.h.b16 %v457
    %v1339 = vunpack.c.l.b16 %v458
    %v1340 = vunpack.c.h.b16 %v458
    %v1341 = vunpack.c.l.b16 %v459
    %v1342 = vunpack.c.h.b16 %v459
    %v1343 = vunpack.c.l.b16 %v460
    %v1344 = vunpack.c.h.b16 %v460
    %v1345 = vunpack.c.l.b16 %v461
    %v1346 = vunpack.c.h.b16 %v461
    %v1347 = vunpack.c.l.b16 %v462
    %v1348 = vunpack.c.h.b16 %v462
    %v1349 = vunpack.c.l.b16 %v463
    %v1350 = vunpack.c.h.b16 %v463
    %v1351 = vunpack.c.l.b16 %v464
    %v1352 = vunpack.c.h.b16 %v464
    %v1353 = vunpack.c.l.b16 %v465
    %v1354 = vunpack.c.h.b16 %v465
    %v1355 = vunpack.c.l.b16 %v466
    %v1356 = vunpack.c.h.b16 %v466
    %v1357 = vunpack.c.l.b16 %v467
    %v1358 = vunpack.c.h.b16 %v467
    %v1359 = vunpack.c.l.b16 %v468
    %v1360 = vunpack.c.h.b16 %v468
    %v1361 = vunpack.c.l.b16 %v469
    %v1362 = vunpack.c.h.b16 %v469
    %v1363 = vunpack.c.l.b16 %v470
    %v1364 = vunpack.c.h.b16 %v470
    %v1365 = vunpack.c.l.b16 %v471
    %v1366 = vunpack.c.h.b16 %v471
    %v1367 = vunpack.c.l.b16 %v472
    %v1368 = vunpack.c.h.b16 %v472
    %v1369 = vunpack.c.l.b16 %v473
    %v1370 = vunpack.c.h.b16 %v473
    %v1371 = vunpack.c.l.b16 %v474
    %v1372 = vunpack.c.h.b16 %v474
    %v1373 = vunpack.c.l.b16 %v475
    %v1374 = vunpack.c.h.b16 %v475
    %v1375 = vunpack.c.l.b16 %v476
    %v1376 = vunpack.c.h.b16 %v476
    %v1377 = vunpack.c.l.b16 %v477
    %v1378 = vunpack.c.h.b16 %v477
    %v1379 = vunpack.c.l.b16 %v478
    %v1380 = vunpack.c.h.b16 %v478
    %v1381 = vunpack.c.l.b16 %v479
    %v1382 = vunpack.c.h.b16 %v479
    %v1383 = vunpack.c.l.b16 %v480
    %v1384 = vunpack.c.h.b16 %v480
    %v1385 = vunpack.c.l.b16 %v481
    %v1386 = vunpack.c.h.b16 %v481
    %v1387 = vunpack.c.l.b16 %v482
    %v1388 = vunpack.c.h.b16 %v482
    %v1389 = vpack.c.b16 %v831, %v813
    %v1390 = vpack.c.b16 %v832, %v814
    %v1391 = vpack.c.b16 %v833, %v815
    %v1392 = vpack.c.b16 %v834, %v816
    %v1393 = vpack.c.b16 %v835, %v817
    %v1394 = vpack.c.b16 %v836, %v818
    %v1395 = vpack.c.b16 %v837, %v819
    %v1396 = vpack.c.b16 %v838, %v820
    %v1397 = vpack.c.b16 %v839, %v821
    %v1398 = vpack.c.b16 %v840, %v822
    %v1399 = vpack.c.b16 %v841, %v823
    %v1400 = vpack.c.b16 %v842, %v824
    %v1401 = vpack.c.b16 %v843, %v825
    %v1402 = vpack.c.b16 %v844, %v826
    %v1403 = vpack.c.b16 %v845, %v827
    %v1404 = vpack.c.b16 %v846, %v828
    %v1405 = vpack.c.b16 %v847, %v829
    %v1406 = vpack.c.b16 %v848, %v830
    %v1407 = vpack.c.b16 %v867, %v849
    %v1408 = vpack.c.b16 %v868, %v850
    %v1409 = vpack.c.b16 %v869, %v851
    %v1410 = vpack.c.b16 %v870, %v852
    %v1411 = vpack.c.b16 %v871, %v853
    %v1412 = vpack.c.b16 %v872, %v854
    %v1413 = vpack.c.b16 %v873, %v855
    %v1414 = vpack.c.b16 %v874, %v856
    %v1415 = vpack.c.b16 %v875, %v857
    %v1416 = vpack.c.b16 %v876, %v858
    %v1417 = vpack.c.b16 %v877, %v859
    %v1418 = vpack.c.b16 %v878, %v860
    %v1419 = vpack.c.b16 %v879, %v861
    %v1420 = vpack.c.b16 %v880, %v862
    %v1421 = vpack.c.b16 %v881, %v863
    %v1422 = vpack.c.b16 %v882, %v864
    %v1423 = vpack.c.b16 %v883, %v865
    %v1424 = vpack.c.b16 %v884, %v866
    %v1425 = vpack.c.b16 %v903, %v885
    %v1426 = vpack.c.b16 %v904, %v886
    %v1427 = vpack.c.b16 %v905, %v887
    %v1428 = vpack.c.b16 %v906, %v888
    %v1429 = vpack.c.b16 %v907, %v889
    %v1430 = vpack.c.b16 %v908, %v890
    %v1431 = vpack.c.b16 %v909, %v891
    %v1432 = vpack.c.b16 %v910, %v892
    %v1433 = vpack.c.b16 %v911, %v893
    %v1434 = vpack.c.b16 %v912, %v894
    %v1435 = vpack.c.b16 %v913, %v895
    %v1436 = vpack.c.b16 %v914, %v896
    %v1437 = vpack.c.b16 %v915, %v897
    %v1438 = vpack.c.b16 %v916, %v898
    %v1439 = vpack.c.b16 %v917, %v899
    %v1440 = vpack.c.b16 %v918, %v900
    %v1441 = vpack.c.b16 %v919, %v901
    %v1442 = vpack.c.b16 %v920, %v902
    %v1443 = vpack.c.b16 %v939, %v921
    %v1444 = vpack.c.b16 %v940, %v922
    %v1445 = vpack.c.b16 %v941, %v923
    %v1446 = vpack.c.b16 %v942, %v924
    %v1447 = vpack.c.b16 %v943, %v925
    %v1448 = vpack.c.b16 %v944, %v926
    %v1449 = vpack.c.b16 %v945, %v927
    %v1450 = vpack.c.b16 %v946, %v928
    %v1451 = vpack.c.b16 %v947, %v929
    %v1452 = vpack.c.b16 %v948, %v930
    %v1453 = vpack.c.b16 %v949, %v931
    %v1454 = vpack.c.b16 %v950, %v932
    %v1455 = vpack.c.b16 %v951, %v933
    %v1456 = vpack.c.b16 %v952, %v934
    %v1457 = vpack.c.b16 %v953, %v935
    %v1458 = vpack.c.b16 %v954, %v936
    %v1459 = vpack.c.b16 %v955, %v937
    %v1460 = vpack.c.b16 %v956, %v938
    %v1461 = vpack.c.b16 %v975, %v957
    %v1462 = vpack.c.b16 %v976, %v958
    %v1463 = vpack.c.b16 %v977, %v959
    %v1464 = vpack.c.b16 %v978, %v960
    %v1465 = vpack.c.b16 %v979, %v961
    %v1466 = vpack.c.b16 %v980, %v962
    %v1467 = vpack.c.b16 %v981, %v963
    %v1468 = vpack.c.b16 %v982, %v964
    %v1469 = vpack.c.b16 %v983, %v965
    %v1470 = vpack.c.b16 %v984, %v966
    %v1471 = vpack.c.b16 %v985, %v967
    %v1472 = vpack.c.b16 %v986, %v968
    %v1473 = vpack.c.b16 %v987, %v969
    %v1474 = vpack.c.b16 %v988, %v970
    %v1475 = vpack.c.b16 %v989, %v971
    %v1476 = vpack.c.b16 %v990, %v972
    %v1477 = vpack.c.b16 %v991, %v973
    %v1478 = vpack.c.b16 %v992, %v974
    %v1479 = vpack.c.b16 %v1011, %v993
    %v1480 = vpack.c.b16 %v1012, %v994
    %v1481 = vpack.c.b16 %v1013, %v995
    %v1482 = vpack.c.b16 %v1014, %v996
    %v1483 = vpack.c.b16 %v1015, %v997
    %v1484 = vpack.c.b16 %v1016, %v998
    %v1485 = vpack.c.b16 %v1017, %v999
    %v1486 = vpack.c.b16 %v1018, %v1000
    %v1487 = vpack.c.b16 %v1019, %v1001
    %v1488 = vpack.c.b16 %v1020, %v1002
    %v1489 = vpack.c.b16 %v1021, %v1003
    %v1490 = vpack.c.b16 %v1022, %v1004
    %v1491 = vpack.c.b16 %v1023, %v1005
    %v1492 = vpack.c.b16 %v1024, %v1006
    %v1493 = vpack.c.b16 %v1025, %v1007
    %v1494 = vpack.c.b16 %v1026, %v1008
    %v1495 = vpack.c.b16 %v1027, %v1009
    %v1496 = vpack.c.b16 %v1028, %v1010
    %v1497 = vpack.c.b16 %v1047, %v1029
    %v1498 = vpack.c.b16 %v1048, %v1030
    %v1499 = vpack.c.b16 %v1049, %v1031
    %v1500 = vpack.c.b16 %v1050, %v1032
    %v1501 = vpack.c.b16 %v1051, %v1033
    %v1502 = vpack.c.b16 %v1052, %v1034
    %v1503 = vpack.c.b16 %v1053, %v1035
    %v1504 = vpack.c.b16 %v1054, %v1036
    %v1505 = vpack.c.b16 %v1055, %v1037
    %v1506 = vpack.c.b16 %v1056, %v1038
    %v1507 = vpack.c.b16 %v1057, %v1039
    %v1508 = vpack.c.b16 %v1058, %v1040
    %v1509 = vpack.c.b16 %v1059, %v1041
    %v1510 = vpack.c.b16 %v1060, %v1042
    %v1511 = vpack.c.b16 %v1061, %v1043
    %v1512 = vpack.c.b16 %v1062, %v1044
    %v1513 = vpack.c.b16 %v1063, %v1045
    %v1514 = vpack.c.b16 %v1064, %v1046
    %v1515 = vpack.c.b16 %v1083, %v1065
    %v1516 = vpack.c.b16 %v1084, %v1066
    %v1517 = vpack.c.b16 %v1085, %v1067
    %v1518 = vpack.c.b16 %v1086, %v1068
    %v1519 = vpack.c.b16 %v1087, %v1069
    %v1520 = vpack.c.b16 %v1088, %v1070
    %v1521 = vpack.c.b16 %v1089, %v1071
    %v1522 = vpack.c.b16 %v1090, %v1072
    %v1523 = vpack.c.b16 %v1091, %v1073
    %v1524 = vpack.c.b16 %v1092, %v1074
    %v1525 = vpack.c.b16 %v1093, %v1075
    %v1526 = vpack.c.b16 %v1094, %v1076
    %v1527 = vpack.c.b16 %v1095, %v1077
    %v1528 = vpack.c.b16 %v1096, %v1078
    %v1529 = vpack.c.b16 %v1097, %v1079
    %v1530 = vpack.c.b16 %v1098, %v1080
    %v1531 = vpack.c.b16 %v1099, %v1081
    %v1532 = vpack.c.b16 %v1100, %v1082
    %v1533 = vpack.c.b16 %v1119, %v1101
    %v1534 = vpack.c.b16 %v1120, %v1102
    %v1535 = vpack.c.b16 %v1121, %v1103
    %v1536 = vpack.c.b16 %v1122, %v1104
    %v1537 = vpack.c.b16 %v1123, %v1105
    %v1538 = vpack.c.b16 %v1124, %v1106
    %v1539 = vpack.c.b16 %v1125, %v1107
    %v1540 = vpack.c.b16 %v1126, %v1108
    %v1541 = vpack.c.b16 %v1127, %v1109
    %v1542 = vpack.c.b16 %v1128, %v1110
    %v1543 = vpack.c.b16 %v1129, %v1111
    %v1544 = vpack.c.b16 %v1130, %v1112
    %v1545 = vpack.c.b16 %v1131, %v1113
    %v1546 = vpack.c.b16 %v1132, %v1114
    %v1547 = vpack.c.b16 %v1133, %v1115
    %v1548 = vpack.c.b16 %v1134, %v1116
    %v1549 = vpack.c.b16 %v1135, %v1117
    %v1550 = vpack.c.b16 %v1136, %v1118
    %v1551 = vpack.c.b16 %v1155, %v1137
    %v1552 = vpack.c.b16 %v1156, %v1138
    %v1553 = vpack.c.b16 %v1157, %v1139
    %v1554 = vpack.c.b16 %v1158, %v1140
    %v1555 = vpack.c.b16 %v1159, %v1141
    %v1556 = vpack.c.b16 %v1160, %v1142
    %v1557 = vpack.c.b16 %v1161, %v1143
    %v1558 = vpack.c.b16 %v1162, %v1144
    %v1559 = vpack.c.b16 %v1163, %v1145
    %v1560 = vpack.c.b16 %v1164, %v1146
    %v1561 = vpack.c.b16 %v1165, %v1147
    %v1562 = vpack.c.b16 %v1166, %v1148
    %v1563 = vpack.c.b16 %v1167, %v1149
    %v1564 = vpack.c.b16 %v1168, %v1150
    %v1565 = vpack.c.b16 %v1169, %v1151
    %v1566 = vpack.c.b16 %v1170, %v1152
    %v1567 = vpack.c.b16 %v1171, %v1153
    %v1568 = vpack.c.b16 %v1172, %v1154
    %v1569 = vpack.c.b16 %v1191, %v1173
    %v1570 = vpack.c.b16 %v1192, %v1174
    %v1571 = vpack.c.b16 %v1193, %v1175
    %v1572 = vpack.c.b16 %v1194, %v1176
    %v1573 = vpack.c.b16 %v1195, %v1177
    %v1574 = vpack.c.b16 %v1196, %v1178
    %v1575 = vpack.c.b16 %v1197, %v1179
    %v1576 = vpack.c.b16 %v1198, %v1180
    %v1577 = vpack.c.b16 %v1199, %v1181
    %v1578 = vpack.c.b16 %v1200, %v1182
    %v1579 = vpack.c.b16 %v1201, %v1183
    %v1580 = vpack.c.b16 %v1202, %v1184
    %v1581 = vpack.c.b16 %v1203, %v1185
    %v1582 = vpack.c.b16 %v1204, %v1186
    %v1583 = vpack.c.b16 %v1205, %v1187
    %v1584 = vpack.c.b16 %v1206, %v1188
    %v1585 = vpack.c.b16 %v1207, %v1189
    %v1586 = vpack.c.b16 %v1208, %v1190
    %v1587 = vpack.c.b16 %v1227, %v1209
    %v1588 = vpack.c.b16 %v1228, %v1210
    %v1589 = vpack.c.b16 %v1229, %v1211
    %v1590 = vpack.c.b16 %v1230, %v1212
    %v1591 = vpack.c.b16 %v1231, %v1213
    %v1592 = vpack.c.b16 %v1232, %v1214
    %v1593 = vpack.c.b16 %v1233, %v1215
    %v1594 = vpack.c.b16 %v1234, %v1216
    %v1595 = vpack.c.b16 %v1235, %v1217
    %v1596 = vpack.c.b16 %v1236, %v1218
    %v1597 = vpack.c.b16 %v1237, %v1219
    %v1598 = vpack.c.b16 %v1238, %v1220
    %v1599 = vpack.c.b16 %v1239, %v1221
    %v1600 = vpack.c.b16 %v1240, %v1222
    %v1601 = vpack.c.b16 %v1241, %v1223
    %v1602 = vpack.c.b16 %v1242, %v1224
    %v1603 = vpack.c.b16 %v1243, %v1225
    %v1604 = vpack.c.b16 %v1244, %v1226
    %v1605 = vpack.c.b16 %v1263, %v1245
    %v1606 = vpack.c.b16 %v1264, %v1246
    %v1607 = vpack.c.b16 %v1265, %v1247
    %v1608 = vpack.c.b16 %v1266, %v1248
    %v1609 = vpack.c.b16 %v1267, %v1249
    %v1610 = vpack.c.b16 %v1268, %v1250
    %v1611 = vpack.c.b16 %v1269, %v1251
    %v1612 = vpack.c.b16 %v1270, %v1252
    %v1613 = vpack.c.b16 %v1271, %v1253
    %v1614 = vpack.c.b16 %v1272, %v1254
    %v1615 = vpack.c.b16 %v1273, %v1255
    %v1616 = vpack.c.b16 %v1274, %v1256
    %v1617 = vpack.c.b16 %v1275, %v1257
    %v1618 = vpack.c.b16 %v1276, %v1258
    %v1619 = vpack.c.b16 %v1277, %v1259
    %v1620 = vpack.c.b16 %v1278, %v1260
    %v1621 = vpack.c.b16 %v1279, %v1261
    %v1622 = vpack.c.b16 %v1280, %v1262
    %v1623 = vpack.c.b16 %v1299, %v1281
    %v1624 = vpack.c.b16 %v1300, %v1282
    %v1625 = vpack.c.b16 %v1301, %v1283
    %v1626 = vpack.c.b16 %v1302, %v1284
    %v1627 = vpack.c.b16 %v1303, %v1285
    %v1628 = vpack.c.b16 %v1304, %v1286
    %v1629 = vpack.c.b16 %v1305, %v1287
    %v1630 = vpack.c.b16 %v1306, %v1288
    %v1631 = vpack.c.b16 %v1307, %v1289
    %v1632 = vpack.c.b16 %v1308, %v1290
    %v1633 = vpack.c.b16 %v1309, %v1291
    %v1634 = vpack.c.b16 %v1310, %v1292
    %v1635 = vpack.c.b16 %v1311, %v1293
    %v1636 = vpack.c.b16 %v1312, %v1294
    %v1637 = vpack.c.b16 %v1313, %v1295
    %v1638 = vpack.c.b16 %v1314, %v1296
    %v1639 = vpack.c.b16 %v1315, %v1297
    %v1640 = vpack.c.b16 %v1316, %v1298
    %v1641 = vpack.c.b16 %v1335, %v1317
    %v1642 = vpack.c.b16 %v1336, %v1318
    %v1643 = vpack.c.b16 %v1337, %v1319
    %v1644 = vpack.c.b16 %v1338, %v1320
    %v1645 = vpack.c.b16 %v1339, %v1321
    %v1646 = vpack.c.b16 %v1340, %v1322
    %v1647 = vpack.c.b16 %v1341, %v1323
    %v1648 = vpack.c.b16 %v1342, %v1324
    %v1649 = vpack.c.b16 %v1343, %v1325
    %v1650 = vpack.c.b16 %v1344, %v1326
    %v1651 = vpack.c.b16 %v1345, %v1327
    %v1652 = vpack.c.b16 %v1346, %v1328
    %v1653 = vpack.c.b16 %v1347, %v1329
    %v1654 = vpack.c.b16 %v1348, %v1330
    %v1655 = vpack.c.b16 %v1349, %v1331
    %v1656 = vpack.c.b16 %v1350, %v1332
    %v1657 = vpack.c.b16 %v1351, %v1333
    %v1658 = vpack.c.b16 %v1352, %v1334
    %v1659 = vpack.c.b16 %v1371, %v1353
    %v1660 = vpack.c.b16 %v1372, %v1354
    %v1661 = vpack.c.b16 %v1373, %v1355
    %v1662 = vpack.c.b16 %v1374, %v1356
    %v1663 = vpack.c.b16 %v1375, %v1357
    %v1664 = vpack.c.b16 %v1376, %v1358
    %v1665 = vpack.c.b16 %v1377, %v1359
    %v1666 = vpack.c.b16 %v1378, %v1360
    %v1667 = vpack.c.b16 %v1379, %v1361
    %v1668 = vpack.c.b16 %v1380, %v1362
    %v1669 = vpack.c.b16 %v1381, %v1363
    %v1670 = vpack.c.b16 %v1382, %v1364
    %v1671 = vpack.c.b16 %v1383, %v1365
    %v1672 = vpack.c.b16 %v1384, %v1366
    %v1673 = vpack.c.b16 %v1385, %v1367
    %v1674 = vpack.c.b16 %v1386, %v1368
    %v1675 = vpack.c.b16 %v1387, %v1369
    %v1676 = vpack.c.b16 %v1388, %v1370
    %1965 = vmatpush.bf16.msra.mxu0 %v1515
    %1966 = vmatpush.bf16.msra.mxu0 %v1497
    %1967 = vmatpush.bf16.msra.mxu0 %v1479
    %1968 = vmatpush.bf16.msra.mxu0 %v1461
    %1969 = vmatpush.bf16.msra.mxu0 %v1443
    %1970 = vmatpush.bf16.msra.mxu0 %v1425
    %1971 = vmatpush.bf16.msra.mxu0 %v1407
    %1972 = vmatpush.bf16.msra.mxu0 %v1389
    %1973 = vmatmul.bf16.gmra.mxu0 %v193
    %v1974 = vpop.f32.mrf.mxu0
    %v1975 = vadd.f32 %v489, %v1974
    %v1976 = vpop.f32.mrf.mxu0
    %1977 = vdwg.mxu0
    %1978 = vmatpush.bf16.msra.mxu0 %v1659
    %1979 = vmatpush.bf16.msra.mxu0 %v1641
    %1980 = vmatpush.bf16.msra.mxu0 %v1623
    %1981 = vmatpush.bf16.msra.mxu0 %v1605
    %1982 = vmatpush.bf16.msra.mxu0 %v1587
    %1983 = vmatpush.bf16.msra.mxu0 %v1569
    %1984 = vmatpush.bf16.msra.mxu0 %v1551
    %1985 = vmatpush.bf16.msra.mxu0 %v1533
    %1986 = vmatmul.bf16.gmra.mxu0 %v194
    %v1987 = vpop.f32.mrf.mxu0
    %v1988 = vadd.f32 %v1975, %v1987
    %v1989 = vpop.f32.mrf.mxu0
    %1990 = vdwg.mxu0
    %1991 = vmatpush.bf16.msra.mxu0 %v1516
    %1992 = vmatpush.bf16.msra.mxu0 %v1498
    %1993 = vmatpush.bf16.msra.mxu0 %v1480
    %1994 = vmatpush.bf16.msra.mxu0 %v1462
    %1995 = vmatpush.bf16.msra.mxu0 %v1444
    %1996 = vmatpush.bf16.msra.mxu0 %v1426
    %1997 = vmatpush.bf16.msra.mxu0 %v1408
    %1998 = vmatpush.bf16.msra.mxu0 %v1390
    %1999 = vmatmul.bf16.gmra.mxu0 %v193
    %v2000 = vpop.f32.mrf.mxu0
    %v2001 = vadd.f32 %v490, %v2000
    %v2002 = vpop.f32.mrf.mxu0
    %2003 = vdwg.mxu0
    %2004 = vmatpush.bf16.msra.mxu0 %v1660
    %2005 = vmatpush.bf16.msra.mxu0 %v1642
    %2006 = vmatpush.bf16.msra.mxu0 %v1624
    %2007 = vmatpush.bf16.msra.mxu0 %v1606
    %2008 = vmatpush.bf16.msra.mxu0 %v1588
    %2009 = vmatpush.bf16.msra.mxu0 %v1570
    %2010 = vmatpush.bf16.msra.mxu0 %v1552
    %2011 = vmatpush.bf16.msra.mxu0 %v1534
    %2012 = vmatmul.bf16.gmra.mxu0 %v194
    %v2013 = vpop.f32.mrf.mxu0
    %v2014 = vadd.f32 %v2001, %v2013
    %v2015 = vpop.f32.mrf.mxu0
    %2016 = vdwg.mxu0
    %2017 = vmatpush.bf16.msra.mxu0 %v1517
    %2018 = vmatpush.bf16.msra.mxu0 %v1499
    %2019 = vmatpush.bf16.msra.mxu0 %v1481
    %2020 = vmatpush.bf16.msra.mxu0 %v1463
    %2021 = vmatpush.bf16.msra.mxu0 %v1445
    %2022 = vmatpush.bf16.msra.mxu0 %v1427
    %2023 = vmatpush.bf16.msra.mxu0 %v1409
    %2024 = vmatpush.bf16.msra.mxu0 %v1391
    %2025 = vmatmul.bf16.gmra.mxu0 %v193
    %v2026 = vpop.f32.mrf.mxu0
    %v2027 = vadd.f32 %v491, %v2026
    %v2028 = vpop.f32.mrf.mxu0
    %2029 = vdwg.mxu0
    %2030 = vmatpush.bf16.msra.mxu0 %v1661
    %2031 = vmatpush.bf16.msra.mxu0 %v1643
    %2032 = vmatpush.bf16.msra.mxu0 %v1625
    %2033 = vmatpush.bf16.msra.mxu0 %v1607
    %2034 = vmatpush.bf16.msra.mxu0 %v1589
    %2035 = vmatpush.bf16.msra.mxu0 %v1571
    %2036 = vmatpush.bf16.msra.mxu0 %v1553
    %2037 = vmatpush.bf16.msra.mxu0 %v1535
    %2038 = vmatmul.bf16.gmra.mxu0 %v194
    %v2039 = vpop.f32.mrf.mxu0
    %v2040 = vadd.f32 %v2027, %v2039
    %v2041 = vpop.f32.mrf.mxu0
    %2042 = vdwg.mxu0
    %2043 = vmatpush.bf16.msra.mxu0 %v1518
    %2044 = vmatpush.bf16.msra.mxu0 %v1500
    %2045 = vmatpush.bf16.msra.mxu0 %v1482
    %2046 = vmatpush.bf16.msra.mxu0 %v1464
    %2047 = vmatpush.bf16.msra.mxu0 %v1446
    %2048 = vmatpush.bf16.msra.mxu0 %v1428
    %2049 = vmatpush.bf16.msra.mxu0 %v1410
    %2050 = vmatpush.bf16.msra.mxu0 %v1392
    %2051 = vmatmul.bf16.gmra.mxu0 %v193
    %v2052 = vpop.f32.mrf.mxu0
    %v2053 = vadd.f32 %v492, %v2052
    %v2054 = vpop.f32.mrf.mxu0
    %2055 = vdwg.mxu0
    %2056 = vmatpush.bf16.msra.mxu0 %v1662
    %2057 = vmatpush.bf16.msra.mxu0 %v1644
    %2058 = vmatpush.bf16.msra.mxu0 %v1626
    %2059 = vmatpush.bf16.msra.mxu0 %v1608
    %2060 = vmatpush.bf16.msra.mxu0 %v1590
    %2061 = vmatpush.bf16.msra.mxu0 %v1572
    %2062 = vmatpush.bf16.msra.mxu0 %v1554
    %2063 = vmatpush.bf16.msra.mxu0 %v1536
    %2064 = vmatmul.bf16.gmra.mxu0 %v194
    %v2065 = vpop.f32.mrf.mxu0
    %v2066 = vadd.f32 %v2053, %v2065
    %v2067 = vpop.f32.mrf.mxu0
    %2068 = vdwg.mxu0
    %2069 = vmatpush.bf16.msra.mxu0 %v1519
    %2070 = vmatpush.bf16.msra.mxu0 %v1501
    %2071 = vmatpush.bf16.msra.mxu0 %v1483
    %2072 = vmatpush.bf16.msra.mxu0 %v1465
    %2073 = vmatpush.bf16.msra.mxu0 %v1447
    %2074 = vmatpush.bf16.msra.mxu0 %v1429
    %2075 = vmatpush.bf16.msra.mxu0 %v1411
    %2076 = vmatpush.bf16.msra.mxu0 %v1393
    %2077 = vmatmul.bf16.gmra.mxu0 %v193
    %v2078 = vpop.f32.mrf.mxu0
    %v2079 = vadd.f32 %v493, %v2078
    %v2080 = vpop.f32.mrf.mxu0
    %2081 = vdwg.mxu0
    %2082 = vmatpush.bf16.msra.mxu0 %v1663
    %2083 = vmatpush.bf16.msra.mxu0 %v1645
    %2084 = vmatpush.bf16.msra.mxu0 %v1627
    %2085 = vmatpush.bf16.msra.mxu0 %v1609
    %2086 = vmatpush.bf16.msra.mxu0 %v1591
    %2087 = vmatpush.bf16.msra.mxu0 %v1573
    %2088 = vmatpush.bf16.msra.mxu0 %v1555
    %2089 = vmatpush.bf16.msra.mxu0 %v1537
    %2090 = vmatmul.bf16.gmra.mxu0 %v194
    %v2091 = vpop.f32.mrf.mxu0
    %v2092 = vadd.f32 %v2079, %v2091
    %v2093 = vpop.f32.mrf.mxu0
    %2094 = vdwg.mxu0
    %2095 = vmatpush.bf16.msra.mxu0 %v1520
    %2096 = vmatpush.bf16.msra.mxu0 %v1502
    %2097 = vmatpush.bf16.msra.mxu0 %v1484
    %2098 = vmatpush.bf16.msra.mxu0 %v1466
    %2099 = vmatpush.bf16.msra.mxu0 %v1448
    %2100 = vmatpush.bf16.msra.mxu0 %v1430
    %2101 = vmatpush.bf16.msra.mxu0 %v1412
    %2102 = vmatpush.bf16.msra.mxu0 %v1394
    %2103 = vmatmul.bf16.gmra.mxu0 %v193
    %v2104 = vpop.f32.mrf.mxu0
    %v2105 = vadd.f32 %v494, %v2104
    %v2106 = vpop.f32.mrf.mxu0
    %2107 = vdwg.mxu0
    %2108 = vmatpush.bf16.msra.mxu0 %v1664
    %2109 = vmatpush.bf16.msra.mxu0 %v1646
    %2110 = vmatpush.bf16.msra.mxu0 %v1628
    %2111 = vmatpush.bf16.msra.mxu0 %v1610
    %2112 = vmatpush.bf16.msra.mxu0 %v1592
    %2113 = vmatpush.bf16.msra.mxu0 %v1574
    %2114 = vmatpush.bf16.msra.mxu0 %v1556
    %2115 = vmatpush.bf16.msra.mxu0 %v1538
    %2116 = vmatmul.bf16.gmra.mxu0 %v194
    %v2117 = vpop.f32.mrf.mxu0
    %v2118 = vadd.f32 %v2105, %v2117
    %v2119 = vpop.f32.mrf.mxu0
    %2120 = vdwg.mxu0
    %2121 = vmatpush.bf16.msra.mxu0 %v1521
    %2122 = vmatpush.bf16.msra.mxu0 %v1503
    %2123 = vmatpush.bf16.msra.mxu0 %v1485
    %2124 = vmatpush.bf16.msra.mxu0 %v1467
    %2125 = vmatpush.bf16.msra.mxu0 %v1449
    %2126 = vmatpush.bf16.msra.mxu0 %v1431
    %2127 = vmatpush.bf16.msra.mxu0 %v1413
    %2128 = vmatpush.bf16.msra.mxu0 %v1395
    %2129 = vmatmul.bf16.gmra.mxu0 %v193
    %v2130 = vpop.f32.mrf.mxu0
    %v2131 = vadd.f32 %v495, %v2130
    %v2132 = vpop.f32.mrf.mxu0
    %2133 = vdwg.mxu0
    %2134 = vmatpush.bf16.msra.mxu0 %v1665
    %2135 = vmatpush.bf16.msra.mxu0 %v1647
    %2136 = vmatpush.bf16.msra.mxu0 %v1629
    %2137 = vmatpush.bf16.msra.mxu0 %v1611
    %2138 = vmatpush.bf16.msra.mxu0 %v1593
    %2139 = vmatpush.bf16.msra.mxu0 %v1575
    %2140 = vmatpush.bf16.msra.mxu0 %v1557
    %2141 = vmatpush.bf16.msra.mxu0 %v1539
    %2142 = vmatmul.bf16.gmra.mxu0 %v194
    %v2143 = vpop.f32.mrf.mxu0
    %v2144 = vadd.f32 %v2131, %v2143
    %v2145 = vpop.f32.mrf.mxu0
    %2146 = vdwg.mxu0
    %2147 = vmatpush.bf16.msra.mxu0 %v1522
    %2148 = vmatpush.bf16.msra.mxu0 %v1504
    %2149 = vmatpush.bf16.msra.mxu0 %v1486
    %2150 = vmatpush.bf16.msra.mxu0 %v1468
    %2151 = vmatpush.bf16.msra.mxu0 %v1450
    %2152 = vmatpush.bf16.msra.mxu0 %v1432
    %2153 = vmatpush.bf16.msra.mxu0 %v1414
    %2154 = vmatpush.bf16.msra.mxu0 %v1396
    %2155 = vmatmul.bf16.gmra.mxu0 %v193
    %v2156 = vpop.f32.mrf.mxu0
    %v2157 = vadd.f32 %v496, %v2156
    %v2158 = vpop.f32.mrf.mxu0
    %2159 = vdwg.mxu0
    %2160 = vmatpush.bf16.msra.mxu0 %v1666
    %2161 = vmatpush.bf16.msra.mxu0 %v1648
    %2162 = vmatpush.bf16.msra.mxu0 %v1630
    %2163 = vmatpush.bf16.msra.mxu0 %v1612
    %2164 = vmatpush.bf16.msra.mxu0 %v1594
    %2165 = vmatpush.bf16.msra.mxu0 %v1576
    %2166 = vmatpush.bf16.msra.mxu0 %v1558
    %2167 = vmatpush.bf16.msra.mxu0 %v1540
    %2168 = vmatmul.bf16.gmra.mxu0 %v194
    %v2169 = vpop.f32.mrf.mxu0
    %v2170 = vadd.f32 %v2157, %v2169
    %v2171 = vpop.f32.mrf.mxu0
    %2172 = vdwg.mxu0
    %2173 = vmatpush.bf16.msra.mxu0 %v1523
    %2174 = vmatpush.bf16.msra.mxu0 %v1505
    %2175 = vmatpush.bf16.msra.mxu0 %v1487
    %2176 = vmatpush.bf16.msra.mxu0 %v1469
    %2177 = vmatpush.bf16.msra.mxu0 %v1451
    %2178 = vmatpush.bf16.msra.mxu0 %v1433
    %2179 = vmatpush.bf16.msra.mxu0 %v1415
    %2180 = vmatpush.bf16.msra.mxu0 %v1397
    %2181 = vmatmul.bf16.gmra.mxu0 %v193
    %v2182 = vpop.f32.mrf.mxu0
    %v2183 = vadd.f32 %v497, %v2182
    %v2184 = vpop.f32.mrf.mxu0
    %2185 = vdwg.mxu0
    %2186 = vmatpush.bf16.msra.mxu0 %v1667
    %2187 = vmatpush.bf16.msra.mxu0 %v1649
    %2188 = vmatpush.bf16.msra.mxu0 %v1631
    %2189 = vmatpush.bf16.msra.mxu0 %v1613
    %2190 = vmatpush.bf16.msra.mxu0 %v1595
    %2191 = vmatpush.bf16.msra.mxu0 %v1577
    %2192 = vmatpush.bf16.msra.mxu0 %v1559
    %2193 = vmatpush.bf16.msra.mxu0 %v1541
    %2194 = vmatmul.bf16.gmra.mxu0 %v194
    %v2195 = vpop.f32.mrf.mxu0
    %v2196 = vadd.f32 %v2183, %v2195
    %v2197 = vpop.f32.mrf.mxu0
    %2198 = vdwg.mxu0
    %2199 = vmatpush.bf16.msra.mxu0 %v1524
    %2200 = vmatpush.bf16.msra.mxu0 %v1506
    %2201 = vmatpush.bf16.msra.mxu0 %v1488
    %2202 = vmatpush.bf16.msra.mxu0 %v1470
    %2203 = vmatpush.bf16.msra.mxu0 %v1452
    %2204 = vmatpush.bf16.msra.mxu0 %v1434
    %2205 = vmatpush.bf16.msra.mxu0 %v1416
    %2206 = vmatpush.bf16.msra.mxu0 %v1398
    %2207 = vmatmul.bf16.gmra.mxu0 %v193
    %v2208 = vpop.f32.mrf.mxu0
    %v2209 = vadd.f32 %v498, %v2208
    %v2210 = vpop.f32.mrf.mxu0
    %2211 = vdwg.mxu0
    %2212 = vmatpush.bf16.msra.mxu0 %v1668
    %2213 = vmatpush.bf16.msra.mxu0 %v1650
    %2214 = vmatpush.bf16.msra.mxu0 %v1632
    %2215 = vmatpush.bf16.msra.mxu0 %v1614
    %2216 = vmatpush.bf16.msra.mxu0 %v1596
    %2217 = vmatpush.bf16.msra.mxu0 %v1578
    %2218 = vmatpush.bf16.msra.mxu0 %v1560
    %2219 = vmatpush.bf16.msra.mxu0 %v1542
    %2220 = vmatmul.bf16.gmra.mxu0 %v194
    %v2221 = vpop.f32.mrf.mxu0
    %v2222 = vadd.f32 %v2209, %v2221
    %v2223 = vpop.f32.mrf.mxu0
    %2224 = vdwg.mxu0
    %2225 = vmatpush.bf16.msra.mxu0 %v1525
    %2226 = vmatpush.bf16.msra.mxu0 %v1507
    %2227 = vmatpush.bf16.msra.mxu0 %v1489
    %2228 = vmatpush.bf16.msra.mxu0 %v1471
    %2229 = vmatpush.bf16.msra.mxu0 %v1453
    %2230 = vmatpush.bf16.msra.mxu0 %v1435
    %2231 = vmatpush.bf16.msra.mxu0 %v1417
    %2232 = vmatpush.bf16.msra.mxu0 %v1399
    %2233 = vmatmul.bf16.gmra.mxu0 %v193
    %v2234 = vpop.f32.mrf.mxu0
    %v2235 = vadd.f32 %v499, %v2234
    %v2236 = vpop.f32.mrf.mxu0
    %2237 = vdwg.mxu0
    %2238 = vmatpush.bf16.msra.mxu0 %v1669
    %2239 = vmatpush.bf16.msra.mxu0 %v1651
    %2240 = vmatpush.bf16.msra.mxu0 %v1633
    %2241 = vmatpush.bf16.msra.mxu0 %v1615
    %2242 = vmatpush.bf16.msra.mxu0 %v1597
    %2243 = vmatpush.bf16.msra.mxu0 %v1579
    %2244 = vmatpush.bf16.msra.mxu0 %v1561
    %2245 = vmatpush.bf16.msra.mxu0 %v1543
    %2246 = vmatmul.bf16.gmra.mxu0 %v194
    %v2247 = vpop.f32.mrf.mxu0
    %v2248 = vadd.f32 %v2235, %v2247
    %v2249 = vpop.f32.mrf.mxu0
    %2250 = vdwg.mxu0
    %2251 = vmatpush.bf16.msra.mxu0 %v1526
    %2252 = vmatpush.bf16.msra.mxu0 %v1508
    %2253 = vmatpush.bf16.msra.mxu0 %v1490
    %2254 = vmatpush.bf16.msra.mxu0 %v1472
    %2255 = vmatpush.bf16.msra.mxu0 %v1454
    %2256 = vmatpush.bf16.msra.mxu0 %v1436
    %2257 = vmatpush.bf16.msra.mxu0 %v1418
    %2258 = vmatpush.bf16.msra.mxu0 %v1400
    %2259 = vmatmul.bf16.gmra.mxu0 %v193
    %v2260 = vpop.f32.mrf.mxu0
    %v2261 = vadd.f32 %v500, %v2260
    %v2262 = vpop.f32.mrf.mxu0
    %2263 = vdwg.mxu0
    %2264 = vmatpush.bf16.msra.mxu0 %v1670
    %2265 = vmatpush.bf16.msra.mxu0 %v1652
    %2266 = vmatpush.bf16.msra.mxu0 %v1634
    %2267 = vmatpush.bf16.msra.mxu0 %v1616
    %2268 = vmatpush.bf16.msra.mxu0 %v1598
    %2269 = vmatpush.bf16.msra.mxu0 %v1580
    %2270 = vmatpush.bf16.msra.mxu0 %v1562
    %2271 = vmatpush.bf16.msra.mxu0 %v1544
    %2272 = vmatmul.bf16.gmra.mxu0 %v194
    %v2273 = vpop.f32.mrf.mxu0
    %v2274 = vadd.f32 %v2261, %v2273
    %v2275 = vpop.f32.mrf.mxu0
    %2276 = vdwg.mxu0
    %2277 = vmatpush.bf16.msra.mxu0 %v1527
    %2278 = vmatpush.bf16.msra.mxu0 %v1509
    %2279 = vmatpush.bf16.msra.mxu0 %v1491
    %2280 = vmatpush.bf16.msra.mxu0 %v1473
    %2281 = vmatpush.bf16.msra.mxu0 %v1455
    %2282 = vmatpush.bf16.msra.mxu0 %v1437
    %2283 = vmatpush.bf16.msra.mxu0 %v1419
    %2284 = vmatpush.bf16.msra.mxu0 %v1401
    %2285 = vmatmul.bf16.gmra.mxu0 %v193
    %v2286 = vpop.f32.mrf.mxu0
    %v2287 = vadd.f32 %v501, %v2286
    %v2288 = vpop.f32.mrf.mxu0
    %2289 = vdwg.mxu0
    %2290 = vmatpush.bf16.msra.mxu0 %v1671
    %2291 = vmatpush.bf16.msra.mxu0 %v1653
    %2292 = vmatpush.bf16.msra.mxu0 %v1635
    %2293 = vmatpush.bf16.msra.mxu0 %v1617
    %2294 = vmatpush.bf16.msra.mxu0 %v1599
    %2295 = vmatpush.bf16.msra.mxu0 %v1581
    %2296 = vmatpush.bf16.msra.mxu0 %v1563
    %2297 = vmatpush.bf16.msra.mxu0 %v1545
    %2298 = vmatmul.bf16.gmra.mxu0 %v194
    %v2299 = vpop.f32.mrf.mxu0
    %v2300 = vadd.f32 %v2287, %v2299
    %v2301 = vpop.f32.mrf.mxu0
    %2302 = vdwg.mxu0
    %2303 = vmatpush.bf16.msra.mxu0 %v1528
    %2304 = vmatpush.bf16.msra.mxu0 %v1510
    %2305 = vmatpush.bf16.msra.mxu0 %v1492
    %2306 = vmatpush.bf16.msra.mxu0 %v1474
    %2307 = vmatpush.bf16.msra.mxu0 %v1456
    %2308 = vmatpush.bf16.msra.mxu0 %v1438
    %2309 = vmatpush.bf16.msra.mxu0 %v1420
    %2310 = vmatpush.bf16.msra.mxu0 %v1402
    %2311 = vmatmul.bf16.gmra.mxu0 %v193
    %v2312 = vpop.f32.mrf.mxu0
    %v2313 = vadd.f32 %v502, %v2312
    %v2314 = vpop.f32.mrf.mxu0
    %2315 = vdwg.mxu0
    %2316 = vmatpush.bf16.msra.mxu0 %v1672
    %2317 = vmatpush.bf16.msra.mxu0 %v1654
    %2318 = vmatpush.bf16.msra.mxu0 %v1636
    %2319 = vmatpush.bf16.msra.mxu0 %v1618
    %2320 = vmatpush.bf16.msra.mxu0 %v1600
    %2321 = vmatpush.bf16.msra.mxu0 %v1582
    %2322 = vmatpush.bf16.msra.mxu0 %v1564
    %2323 = vmatpush.bf16.msra.mxu0 %v1546
    %2324 = vmatmul.bf16.gmra.mxu0 %v194
    %v2325 = vpop.f32.mrf.mxu0
    %v2326 = vadd.f32 %v2313, %v2325
    %v2327 = vpop.f32.mrf.mxu0
    %2328 = vdwg.mxu0
    %2329 = vmatpush.bf16.msra.mxu0 %v1529
    %2330 = vmatpush.bf16.msra.mxu0 %v1511
    %2331 = vmatpush.bf16.msra.mxu0 %v1493
    %2332 = vmatpush.bf16.msra.mxu0 %v1475
    %2333 = vmatpush.bf16.msra.mxu0 %v1457
    %2334 = vmatpush.bf16.msra.mxu0 %v1439
    %2335 = vmatpush.bf16.msra.mxu0 %v1421
    %2336 = vmatpush.bf16.msra.mxu0 %v1403
    %2337 = vmatmul.bf16.gmra.mxu0 %v193
    %v2338 = vpop.f32.mrf.mxu0
    %v2339 = vadd.f32 %v503, %v2338
    %v2340 = vpop.f32.mrf.mxu0
    %2341 = vdwg.mxu0
    %2342 = vmatpush.bf16.msra.mxu0 %v1673
    %2343 = vmatpush.bf16.msra.mxu0 %v1655
    %2344 = vmatpush.bf16.msra.mxu0 %v1637
    %2345 = vmatpush.bf16.msra.mxu0 %v1619
    %2346 = vmatpush.bf16.msra.mxu0 %v1601
    %2347 = vmatpush.bf16.msra.mxu0 %v1583
    %2348 = vmatpush.bf16.msra.mxu0 %v1565
    %2349 = vmatpush.bf16.msra.mxu0 %v1547
    %2350 = vmatmul.bf16.gmra.mxu0 %v194
    %v2351 = vpop.f32.mrf.mxu0
    %v2352 = vadd.f32 %v2339, %v2351
    %v2353 = vpop.f32.mrf.mxu0
    %2354 = vdwg.mxu0
    %2355 = vmatpush.bf16.msra.mxu0 %v1530
    %2356 = vmatpush.bf16.msra.mxu0 %v1512
    %2357 = vmatpush.bf16.msra.mxu0 %v1494
    %2358 = vmatpush.bf16.msra.mxu0 %v1476
    %2359 = vmatpush.bf16.msra.mxu0 %v1458
    %2360 = vmatpush.bf16.msra.mxu0 %v1440
    %2361 = vmatpush.bf16.msra.mxu0 %v1422
    %2362 = vmatpush.bf16.msra.mxu0 %v1404
    %2363 = vmatmul.bf16.gmra.mxu0 %v193
    %v2364 = vpop.f32.mrf.mxu0
    %v2365 = vadd.f32 %v504, %v2364
    %v2366 = vpop.f32.mrf.mxu0
    %2367 = vdwg.mxu0
    %2368 = vmatpush.bf16.msra.mxu0 %v1674
    %2369 = vmatpush.bf16.msra.mxu0 %v1656
    %2370 = vmatpush.bf16.msra.mxu0 %v1638
    %2371 = vmatpush.bf16.msra.mxu0 %v1620
    %2372 = vmatpush.bf16.msra.mxu0 %v1602
    %2373 = vmatpush.bf16.msra.mxu0 %v1584
    %2374 = vmatpush.bf16.msra.mxu0 %v1566
    %2375 = vmatpush.bf16.msra.mxu0 %v1548
    %2376 = vmatmul.bf16.gmra.mxu0 %v194
    %v2377 = vpop.f32.mrf.mxu0
    %v2378 = vadd.f32 %v2365, %v2377
    %v2379 = vpop.f32.mrf.mxu0
    %2380 = vdwg.mxu0
    %2381 = vmatpush.bf16.msra.mxu0 %v1531
    %2382 = vmatpush.bf16.msra.mxu0 %v1513
    %2383 = vmatpush.bf16.msra.mxu0 %v1495
    %2384 = vmatpush.bf16.msra.mxu0 %v1477
    %2385 = vmatpush.bf16.msra.mxu0 %v1459
    %2386 = vmatpush.bf16.msra.mxu0 %v1441
    %2387 = vmatpush.bf16.msra.mxu0 %v1423
    %2388 = vmatpush.bf16.msra.mxu0 %v1405
    %2389 = vmatmul.bf16.gmra.mxu0 %v193
    %v2390 = vpop.f32.mrf.mxu0
    %v2391 = vadd.f32 %v505, %v2390
    %v2392 = vpop.f32.mrf.mxu0
    %2393 = vdwg.mxu0
    %2394 = vmatpush.bf16.msra.mxu0 %v1675
    %2395 = vmatpush.bf16.msra.mxu0 %v1657
    %2396 = vmatpush.bf16.msra.mxu0 %v1639
    %2397 = vmatpush.bf16.msra.mxu0 %v1621
    %2398 = vmatpush.bf16.msra.mxu0 %v1603
    %2399 = vmatpush.bf16.msra.mxu0 %v1585
    %2400 = vmatpush.bf16.msra.mxu0 %v1567
    %2401 = vmatpush.bf16.msra.mxu0 %v1549
    %2402 = vmatmul.bf16.gmra.mxu0 %v194
    %v2403 = vpop.f32.mrf.mxu0
    %v2404 = vadd.f32 %v2391, %v2403
    %v2405 = vpop.f32.mrf.mxu0
    %2406 = vdwg.mxu0
    %2407 = vmatpush.bf16.msra.mxu0 %v1532
    %2408 = vmatpush.bf16.msra.mxu0 %v1514
    %2409 = vmatpush.bf16.msra.mxu0 %v1496
    %2410 = vmatpush.bf16.msra.mxu0 %v1478
    %2411 = vmatpush.bf16.msra.mxu0 %v1460
    %2412 = vmatpush.bf16.msra.mxu0 %v1442
    %2413 = vmatpush.bf16.msra.mxu0 %v1424
    %2414 = vmatpush.bf16.msra.mxu0 %v1406
    %2415 = vmatmul.bf16.gmra.mxu0 %v193
    %v2416 = vpop.f32.mrf.mxu0
    %v2417 = vadd.f32 %v506, %v2416
    %v2418 = vpop.f32.mrf.mxu0
    %2419 = vdwg.mxu0
    %2420 = vmatpush.bf16.msra.mxu0 %v1676
    %2421 = vmatpush.bf16.msra.mxu0 %v1658
    %2422 = vmatpush.bf16.msra.mxu0 %v1640
    %2423 = vmatpush.bf16.msra.mxu0 %v1622
    %2424 = vmatpush.bf16.msra.mxu0 %v1604
    %2425 = vmatpush.bf16.msra.mxu0 %v1586
    %2426 = vmatpush.bf16.msra.mxu0 %v1568
    %2427 = vmatpush.bf16.msra.mxu0 %v1550
    %2428 = vmatmul.bf16.gmra.mxu0 %v194
    %v2429 = vpop.f32.mrf.mxu0
    %v2430 = vadd.f32 %v2417, %v2429
    %v2431 = vpop.f32.mrf.mxu0
    %2432 = vdwg.mxu0
    %2433 = vst [vmem:[#allocation2] sm:$0xff] %v1988
    %2434 = vst [vmem:[#allocation2 + $0x8] sm:$0xff] %v2014
    %2435 = vst [vmem:[#allocation2 + $0x10] sm:$0xff] %v2040
    %2436 = vst [vmem:[#allocation2 + $0x18] sm:$0xff] %v2066
    %2437 = vst [vmem:[#allocation2 + $0x20] sm:$0xff] %v2092
    %2438 = vst [vmem:[#allocation2 + $0x28] sm:$0xff] %v2118
    %2439 = vst [vmem:[#allocation2 + $0x30] sm:$0xff] %v2144
    %2440 = vst [vmem:[#allocation2 + $0x38] sm:$0xff] %v2170
    %2441 = vst [vmem:[#allocation2 + $0x40] sm:$0xff] %v2196
    %2442 = vst [vmem:[#allocation2 + $0x48] sm:$0xff] %v2222
    %2443 = vst [vmem:[#allocation2 + $0x50] sm:$0xff] %v2248
    %2444 = vst [vmem:[#allocation2 + $0x58] sm:$0xff] %v2274
    %2445 = vst [vmem:[#allocation2 + $0x60] sm:$0xff] %v2300
    %2446 = vst [vmem:[#allocation2 + $0x68] sm:$0xff] %v2326
    %2447 = vst [vmem:[#allocation2 + $0x70] sm:$0xff] %v2352
    %2448 = vst [vmem:[#allocation2 + $0x78] sm:$0xff] %v2378
    %2449 = vst [vmem:[#allocation2 + $0x80] sm:$0xff] %v2404
    %vm2450 = vcmask 89088
    %2451 = vst.msk [vmem:[#allocation2 + $0x88] sm:$0xff] %vm2450, %v2430
    // Predicated region
    $region30: #{tpu_custom_call.1} parent=1 // pred_check
      _
    $region31: #{tpu_custom_call.1} parent=1 // pred_check_branch
      %2453 = sbr.rel (0) target = $region33
    $region32: #{tpu_custom_call.1} parent=1 // pred_region
      %2455 = vsyncadd [#allocation3], 0
      %s2457 = sshll.u32 [#allocation2], 4
      %s2458 = int_to_ptr.vmem [resolvable:$true] %s2457
      %s2459 = sshll.u32 %s7, 4
      %s2460 = int_to_ptr.hbm [resolvable:$true] %s2459
      %2462 = dma.vmem_to_hbm [thread:$0]  %s2458, 2304, %s2460, [#allocation3]
    $region33: #{tpu_custom_call.1} parent=1 // pred_fallthru
      _
    // Predicated region
    $region34: #{tpu_custom_call.1} parent=1 // pred_check
      _
    $region35: #{tpu_custom_call.1} parent=1 // pred_check_branch
      %2464 = sbr.rel (0) target = $region37
    $region36: #{tpu_custom_call.1} parent=1 // pred_region
      %2466 = dma.done [#allocation3], 2304
    $region37: #{tpu_custom_call.1} parent=1 // pred_fallthru
      _
    %2467 = vsyncpa [#allocation3], 1

</llo_original>
